<compile_context>
chip_gen: v7x
topology: tpu7x:2x2x1
jax: 0.10.0
libtpu: 0.0.40
codegen_flags: <defaults>
</compile_context>

<pallas_src>
import numpy as np
import jax
import jax.numpy as jnp
from jax import lax
from jax.experimental import pallas as pl
from jax.experimental.pallas import tpu as pltpu

# ---- model / problem sizes (small, deterministic) ---------------------------
H, D_MODEL, D_K, D_V, D_FF = 4, 32, 8, 8, 64
B, S_IN, S_OUT = 2, 12, 8
EPS = 1e-5  # nn.LayerNorm default

HDK, HDV = H * D_K, H * D_V          # 32, 32
QKV_W = 2 * HDK + HDV                # 96  fused self-attn [q|k|v] width
HBSQ = H * B * S_OUT                 # 64  head-stacked (head, batch, query) rows
MAT_COLS = QKV_W                     # 96

# ---- packed slab layout (row offsets; sublane-aligned blocks) ----------------
R_QKV1 = 0                           # (D_MODEL, 96)   [Wq1/√dk | Wk1 | Wv1]
R_KV2  = R_QKV1 + D_MODEL            # (D_MODEL, 64)   [Wk2 | Wv2]
R_W1   = R_KV2 + D_MODEL             # (D_MODEL, D_FF)
R_W2   = R_W1 + D_MODEL              # (D_FF, D_MODEL)
R_WO1  = R_W2 + D_FF                 # (HDV, D_MODEL)
R_WQ2  = R_WO1 + HDV                 # (D_MODEL, HDK)  Wq2/√dk
R_WO2  = R_WQ2 + D_MODEL             # (HDV, D_MODEL)
R_VEC  = R_WO2 + HDV                 # 16 bias / LayerNorm rows
VEC_ROWS = 16
R_SEL   = R_VEC + VEC_ROWS           # (64, HDK)        block-diag head selector
R_MASK1 = R_SEL + HBSQ               # (64, B*S_OUT)    causal + batch additive mask
R_MASK2 = R_MASK1 + HBSQ             # (64, B*S_IN)     batch additive mask (cross)
W_ROWS  = R_MASK2 + HBSQ             # 464

(V_BQKV1, V_BO1, V_G1, V_BE1, V_BQ2, V_BKV2, V_BO2, V_G2, V_BE2,
 V_B1, V_B2, V_G3, V_BE3) = range(13)


# ---- shared math -------------------------------------------------------------
def _layer_norm(x, w, b):
    mu = jnp.mean(x, axis=-1, keepdims=True)
    var = jnp.mean((x - mu) ** 2, axis=-1, keepdims=True)  # biased, like torch
    return (x - mu) * lax.rsqrt(var + EPS) * w + b


# ---- trace-time constants (baked into the weight slab) -----------------------
def _attn_constants():
    """Head selector + additive masks for the batch-folded, head-stacked layout.

    Rows r of the (HBSQ, ·) score matrix are (head, batch, query) triples:
      head = r // (B*S_OUT), batch = (r % (B*S_OUT)) // S_OUT, query = r % S_OUT.
    """
    r = np.arange(HBSQ)
    head = r // (B * S_OUT)
    rb = (r % (B * S_OUT)) // S_OUT
    q = r % S_OUT

    # Block-diagonal selector: row block of head h keeps head h's feature cols.
    # Works for both Q (D_K blocks) and ctx (D_V blocks) since D_K == D_V.
    sel = (head[:, None] == (np.arange(HDK)[None, :] // D_K)).astype(np.float32)

    # Self-attention: causal within the same batch element, -1e9 elsewhere.
    c1 = np.arange(B * S_OUT)
    m1 = np.where((rb[:, None] == (c1 // S_OUT)[None, :]) &
                  ((c1 % S_OUT)[None, :] <= q[:, None]),
                  0.0, -1e9).astype(np.float32)

    # Cross-attention on memory: only same-batch keys are visible.
    c2 = np.arange(B * S_IN)
    m2 = np.where(rb[:, None] == (c2 // S_IN)[None, :],
                  0.0, -1e9).astype(np.float32)
    return sel, m1, m2


# ---- in-kernel head-batched attention (no per-head loop, no fold matmul) -----
def _attn(Q, K, V, sel, amask):
    """Q: (B*Sq, HDK) pre-scaled by 1/sqrt(d_K); K: (B*Sk, HDK); V: (B*Sk, HDV).

    Queries are stacked head-wise along sublanes; `sel` (constant) zeroes
    cross-head columns; `amask` (constant) applies causal / batch masking.
    Returns (B*Sq, HDV) with heads concatenated on the lane axis.
    """
    f32 = jnp.float32
    BSq = Q.shape[0]
    Qs = jnp.concatenate([Q] * H, axis=0) * sel                     # (HBSQ, HDK)
    s = jnp.einsum('rc,kc->rk', Qs, K,
                   preferred_element_type=f32) + amask              # (HBSQ, B*Sk)
    s = s - jnp.max(s, axis=-1, keepdims=True)
    e = jnp.exp(s)
    p = e * (1.0 / jnp.sum(e, axis=-1, keepdims=True))              # exact softmax
    ctx = jnp.dot(p, V, preferred_element_type=f32) * sel           # (HBSQ, HDV)
    # Fold the H row blocks back to (B*Sq, HDV) with 3 vreg-aligned adds.
    out = ctx[0:BSq]
    for h in range(1, H):
        out = out + ctx[h * BSq:(h + 1) * BSq]
    return out


# ---- Pallas kernel -----------------------------------------------------------
def decoder_unit_kernel(mem_ref, seq_ref, w_ref, out_ref):
    f32 = jnp.float32
    seq = seq_ref[...]                                   # (B*S_OUT, D_MODEL)
    memory = mem_ref[...]                                # (B*S_IN, D_MODEL)

    def vrow(i, w):                                      # (1, w) bias / LN row
        return w_ref[R_VEC + i:R_VEC + i + 1, 0:w]

    sel = w_ref[R_SEL:R_SEL + HBSQ, 0:HDK]               # constant selector

    # -- masked self-attention (fused q|k|v projection: one MXU launch) --
    Wqkv1 = w_ref[R_QKV1:R_QKV1 + D_MODEL, :]
    qkv = jnp.dot(seq, Wqkv1, preferred_element_type=f32) + vrow(V_BQKV1, QKV_W)
    m1 = w_ref[R_MASK1:R_MASK1 + HBSQ, 0:B * S_OUT]
    a1 = _attn(qkv[:, 0:HDK], qkv[:, HDK:2 * HDK], qkv[:, 2 * HDK:QKV_W], sel, m1)
    Wo1 = w_ref[R_WO1:R_WO1 + HDV, 0:D_MODEL]
    a1 = jnp.dot(a1, Wo1, preferred_element_type=f32) + vrow(V_BO1, D_MODEL)
    a1 = _layer_norm(seq + a1, vrow(V_G1, D_MODEL), vrow(V_BE1, D_MODEL))

    # -- cross-attention on encoder memory (fused k|v projection) --
    Wq2 = w_ref[R_WQ2:R_WQ2 + D_MODEL, 0:HDK]
    q2 = jnp.dot(a1, Wq2, preferred_element_type=f32) + vrow(V_BQ2, HDK)
    Wkv2 = w_ref[R_KV2:R_KV2 + D_MODEL, 0:HDK + HDV]
    kv2 = jnp.dot(memory, Wkv2, preferred_element_type=f32) + vrow(V_BKV2, HDK + HDV)
    m2 = w_ref[R_MASK2:R_MASK2 + HBSQ, 0:B * S_IN]
    a2 = _attn(q2, kv2[:, 0:HDK], kv2[:, HDK:HDK + HDV], sel, m2)
    Wo2 = w_ref[R_WO2:R_WO2 + HDV, 0:D_MODEL]
    a2 = jnp.dot(a2, Wo2, preferred_element_type=f32) + vrow(V_BO2, D_MODEL)
    a2 = _layer_norm(a1 + a2, vrow(V_G2, D_MODEL), vrow(V_BE2, D_MODEL))

    # -- feed-forward network --
    W1 = w_ref[R_W1:R_W1 + D_MODEL, 0:D_FF]
    hdn = jnp.maximum(jnp.dot(a2, W1, preferred_element_type=f32) + vrow(V_B1, D_FF), 0.0)
    W2 = w_ref[R_W2:R_W2 + D_FF, 0:D_MODEL]
    a3 = jnp.dot(hdn, W2, preferred_element_type=f32) + vrow(V_B2, D_MODEL)
    a3 = _layer_norm(a2 + a3, vrow(V_G3, D_MODEL), vrow(V_BE3, D_MODEL))

    out_ref[...] = a3.astype(out_ref.dtype)


def decoder_unit(memory, seq, wslab):
    mem2d = memory.reshape(B * S_IN, D_MODEL)
    seq2d = seq.reshape(B * S_OUT, D_MODEL)
    out2d = pl.pallas_call(
        decoder_unit_kernel,
        out_shape=jax.ShapeDtypeStruct((B * S_OUT, D_MODEL), jnp.float32),
        grid=(1,),
        in_specs=[
            pl.BlockSpec((B * S_IN, D_MODEL), lambda i: (0, 0)),
            pl.BlockSpec((B * S_OUT, D_MODEL), lambda i: (0, 0)),
            pl.BlockSpec((W_ROWS, MAT_COLS), lambda i: (0, 0)),   # one packed slab
        ],
        out_specs=pl.BlockSpec((B * S_OUT, D_MODEL), lambda i: (0, 0)),
        compiler_params=pltpu.CompilerParams(dimension_semantics=("arbitrary",)),
    )(mem2d, seq2d, wslab)
    return out2d.reshape(B, S_OUT, D_MODEL)


# ---- parameter construction / packing ---------------------------------------
def make_params(key):
    def lin(k, fi, fo):
        k1, k2 = jax.random.split(k)
        W = jax.random.normal(k1, (fi, fo), jnp.float32) / np.sqrt(fi)
        b = jax.random.normal(k2, (fo,), jnp.float32) * 0.02
        return W, b

    ks = jax.random.split(key, 16)
    p = {}
    p['Wq1'], p['bq1'] = lin(ks[0], D_MODEL, HDK)
    p['Wk1'], p['bk1'] = lin(ks[1], D_MODEL, HDK)
    p['Wv1'], p['bv1'] = lin(ks[2], D_MODEL, HDV)
    p['Wo1'], p['bo1'] = lin(ks[3], HDV, D_MODEL)
    p['Wq2'], p['bq2'] = lin(ks[4], D_MODEL, HDK)
    p['Wk2'], p['bk2'] = lin(ks[5], D_MODEL, HDK)
    p['Wv2'], p['bv2'] = lin(ks[6], D_MODEL, HDV)
    p['Wo2'], p['bo2'] = lin(ks[7], HDV, D_MODEL)
    p['W1'], p['b1'] = lin(ks[8], D_MODEL, D_FF)
    p['W2'], p['b2'] = lin(ks[9], D_FF, D_MODEL)
    for i, n in enumerate(('1', '2', '3')):
        p['g' + n] = 1.0 + 0.1 * jax.random.normal(ks[10 + i], (D_MODEL,), jnp.float32)
        p['be' + n] = 0.05 * jax.random.normal(ks[13 + i], (D_MODEL,), jnp.float32)
    return p


def pack_params(p):
    """Pack matrices, bias/LN rows and attention constants into one (464,96) slab."""
    scale = 1.0 / float(np.sqrt(D_K))   # folded into the Q projections

    def pad_cols(w):
        return jnp.pad(w, ((0, 0), (0, MAT_COLS - w.shape[1])))

    def row(v):
        return jnp.pad(v, (0, MAT_COLS - v.shape[0]))[None, :]

    sel, m1, m2 = _attn_constants()

    slab = jnp.concatenate([
        pad_cols(jnp.concatenate([p['Wq1'] * scale, p['Wk1'], p['Wv1']], axis=1)),
        pad_cols(jnp.concatenate([p['Wk2'], p['Wv2']], axis=1)),
        pad_cols(p['W1']), pad_cols(p['W2']),
        pad_cols(p['Wo1']), pad_cols(p['Wq2'] * scale), pad_cols(p['Wo2']),
        row(jnp.concatenate([p['bq1'] * scale, p['bk1'], p['bv1']])),
        row(p['bo1']), row(p['g1']), row(p['be1']),
        row(p['bq2'] * scale), row(jnp.concatenate([p['bk2'], p['bv2']])),
        row(p['bo2']), row(p['g2']), row(p['be2']),
        row(p['b1']), row(p['b2']), row(p['g3']), row(p['be3']),
        jnp.zeros((VEC_ROWS - 13, MAT_COLS), jnp.float32),
        pad_cols(jnp.asarray(sel)),
        pad_cols(jnp.asarray(m1)),
        pad_cols(jnp.asarray(m2)),
    ], axis=0)
    assert slab.shape == (W_ROWS, MAT_COLS)
    return slab


# ---- independent pure-JAX reference (per-head loop on raw, unfused params) ---
def _mha_ref(q_in, kv_in, Wq, bq, Wk, bk, Wv, bv, Wo, bo, causal):
    Q = q_in @ Wq + bq
    K = kv_in @ Wk + bk
    V = kv_in @ Wv + bv
    Sq, Sk = q_in.shape[0], kv_in.shape[0]
    heads = []
    for h in range(H):
        Qh = Q[:, h * D_K:(h + 1) * D_K]
        Kh = K[:, h * D_K:(h + 1) * D_K]
        Vh = V[:, h * D_V:(h + 1) * D_V]
        s = (Qh @ Kh.T) / np.sqrt(D_K)
        if causal:
            rr = lax.broadcasted_iota(jnp.int32, (Sq, Sk), 0)
            cc = lax.broadcasted_iota(jnp.int32, (Sq, Sk), 1)
            s = jnp.where(cc <= rr, s, -1e9)
        s = s - jnp.max(s, axis=-1, keepdims=True)
        pr = jnp.exp(s)
        pr = pr / jnp.sum(pr, axis=-1, keepdims=True)
        heads.append(pr @ Vh)
    return jnp.concatenate(heads, axis=-1) @ Wo + bo


def _decoder_ref_one(memory, seq, p):
    a1 = _mha_ref(seq, seq, p['Wq1'], p['bq1'], p['Wk1'], p['bk1'],
                  p['Wv1'], p['bv1'], p['Wo1'], p['bo1'], causal=True)
    a1 = _layer_norm(seq + a1, p['g1'], p['be1'])
    a2 = _mha_ref(a1, memory, p['Wq2'], p['bq2'], p['Wk2'], p['bk2'],
                  p['Wv2'], p['bv2'], p['Wo2'], p['bo2'], causal=False)
    a2 = _layer_norm(a1 + a2, p['g2'], p['be2'])
    a3 = jnp.maximum(a2 @ p['W1'] + p['b1'], 0.0) @ p['W2'] + p['b2']
    a3 = _layer_norm(a2 + a3, p['g3'], p['be3'])
    return a3


def decoder_unit_ref(memory, seq, p):
    return jax.vmap(lambda m, s: _decoder_ref_one(m, s, p))(memory, seq)


if __name__ == "__main__":
    key = jax.random.PRNGKey(0)
    k_mem, k_seq, k_par = jax.random.split(key, 3)
    memory = jax.random.normal(k_mem, (B, S_IN, D_MODEL), jnp.float32)
    seq = jax.random.normal(k_seq, (B, S_OUT, D_MODEL), jnp.float32)
    params = make_params(k_par)
    wslab = pack_params(params)

    out = jax.block_until_ready(decoder_unit(memory, seq, wslab))
    ref = jax.block_until_ready(decoder_unit_ref(memory, seq, params))

    # Softmax normalization is now exact (approx reciprocal removed); remaining
    # differences come from MXU vs XLA matmul rounding, so tolerance tightened.
    np.testing.assert_allclose(np.asarray(out), np.asarray(ref), rtol=3e-3, atol=3e-3)

    print("KERNEL_OK")
</pallas_src>

<mosaic_0001>
module attributes {stable_mosaic.version = 11 : i64} {
  func.func @decoder_unit_kernel(%arg0: i32, %arg1: memref<24x32xf32, #tpu.memory_space<vmem>>, %arg2: memref<16x32xf32, #tpu.memory_space<vmem>>, %arg3: memref<464x96xf32, #tpu.memory_space<vmem>>, %arg4: memref<16x32xf32, #tpu.memory_space<vmem>>) attributes {dimension_semantics = [#tpu.dimension_semantics<arbitrary>], iteration_bounds = array<i64: 1>, scalar_prefetch = 0 : i64, scratch_operands = 0 : i64, tpu.core_type = #tpu.core_type<tc>, window_params = [{pipeline_mode = #tpu.pipeline_mode<synchronous>, transform_indices = @transform_0, window_bounds = array<i64: 24, 32>}, {pipeline_mode = #tpu.pipeline_mode<synchronous>, transform_indices = @transform_1, window_bounds = array<i64: 16, 32>}, {pipeline_mode = #tpu.pipeline_mode<synchronous>, transform_indices = @transform_2, window_bounds = array<i64: 464, 96>}, {pipeline_mode = #tpu.pipeline_mode<synchronous>, transform_indices = @transform_3, window_bounds = array<i64: 16, 32>}]} {
    %c0 = arith.constant 0 : index
    %c0_0 = arith.constant 0 : index
    %0 = vector.load %arg2[%c0, %c0_0] : memref<16x32xf32, #tpu.memory_space<vmem>>, vector<16x32xf32>
    %c0_1 = arith.constant 0 : index
    %c0_2 = arith.constant 0 : index
    %1 = vector.load %arg1[%c0_1, %c0_2] : memref<24x32xf32, #tpu.memory_space<vmem>>, vector<24x32xf32>
    %c272 = arith.constant 272 : index
    %c0_3 = arith.constant 0 : index
    %2 = vector.load %arg3[%c272, %c0_3] : memref<464x96xf32, #tpu.memory_space<vmem>>, vector<64x32xf32>
    %c0_4 = arith.constant 0 : index
    %c0_5 = arith.constant 0 : index
    %3 = vector.load %arg3[%c0_4, %c0_5] : memref<464x96xf32, #tpu.memory_space<vmem>>, vector<32x96xf32>
    %cst = arith.constant dense<0.000000e+00> : vector<16x96xf32>
    %4 = tpu.matmul %0, %3, %cst {dimension_numbers = #tpu.dot_dimension_numbers<[1], [0], [0], [1], [0, 0, 1, 1], [], []>} : vector<16x32xf32>, vector<32x96xf32>, vector<16x96xf32> -> vector<16x96xf32>
    %c256 = arith.constant 256 : index
    %c0_6 = arith.constant 0 : index
    %5 = vector.load %arg3[%c256, %c0_6] : memref<464x96xf32, #tpu.memory_space<vmem>>, vector<1x96xf32>
    %6 = vector.broadcast %5 : vector<1x96xf32> to vector<16x96xf32>
    %7 = arith.addf %4, %6 : vector<16x96xf32>
    %c336 = arith.constant 336 : index
    %c0_7 = arith.constant 0 : index
    %8 = vector.load %arg3[%c336, %c0_7] : memref<464x96xf32, #tpu.memory_space<vmem>>, vector<64x16xf32>
    %9 = vector.extract_strided_slice %7 {offsets = [0, 0], sizes = [16, 32], strides = [1, 1]} : vector<16x96xf32> to vector<16x32xf32>
    %10 = vector.extract_strided_slice %7 {offsets = [0, 32], sizes = [16, 32], strides = [1, 1]} : vector<16x96xf32> to vector<16x32xf32>
    %11 = vector.extract_strided_slice %7 {offsets = [0, 64], sizes = [16, 32], strides = [1, 1]} : vector<16x96xf32> to vector<16x32xf32>
    %12 = tpu.concatenate %9, %9, %9, %9 in 0 : vector<16x32xf32>, vector<16x32xf32>, vector<16x32xf32>, vector<16x32xf32> -> vector<64x32xf32>
    %13 = arith.mulf %12, %2 : vector<64x32xf32>
    "tpu.trace_start"() <{level = 10 : i32, message = "rc,kc->rk"}> : () -> ()
    %cst_8 = arith.constant dense<0.000000e+00> : vector<64x16xf32>
    %14 = tpu.matmul %13, %10, %cst_8 {dimension_numbers = #tpu.dot_dimension_numbers<[1], [1], [0], [0], [0, 0, 1, 0], [], []>} : vector<64x32xf32>, vector<16x32xf32>, vector<64x16xf32> -> vector<64x16xf32>
    "tpu.trace_stop"() : () -> ()
    %15 = arith.addf %14, %8 : vector<64x16xf32>
    %cst_9 = arith.constant dense<0xFF800000> : vector<64xf32>
    %16 = vector.multi_reduction <maximumf>, %15, %cst_9 [1] : vector<64x16xf32> to vector<64xf32>
    %17 = vector.shape_cast %16 : vector<64xf32> to vector<64x1xf32>
    %18 = vector.broadcast %17 : vector<64x1xf32> to vector<64x16xf32>
    %19 = arith.subf %15, %18 : vector<64x16xf32>
    %20 = math.exp %19 : vector<64x16xf32>
    %cst_10 = arith.constant dense<0.000000e+00> : vector<64xf32>
    %21 = vector.multi_reduction <add>, %20, %cst_10 [1] : vector<64x16xf32> to vector<64xf32>
    %22 = vector.shape_cast %21 : vector<64xf32> to vector<64x1xf32>
    %cst_11 = arith.constant 1.000000e+00 : f32
    %23 = vector.broadcast %cst_11 : f32 to vector<64x1xf32>
    %24 = arith.divf %23, %22 : vector<64x1xf32>
    %25 = vector.broadcast %24 : vector<64x1xf32> to vector<64x16xf32>
    %26 = arith.mulf %20, %25 : vector<64x16xf32>
    %cst_12 = arith.constant dense<0.000000e+00> : vector<64x32xf32>
    %27 = tpu.matmul %26, %11, %cst_12 {dimension_numbers = #tpu.dot_dimension_numbers<[1], [0], [0], [1], [0, 0, 1, 1], [], []>} : vector<64x16xf32>, vector<16x32xf32>, vector<64x32xf32> -> vector<64x32xf32>
    %28 = arith.mulf %27, %2 : vector<64x32xf32>
    %29 = vector.extract_strided_slice %28 {offsets = [0, 0], sizes = [16, 32], strides = [1, 1]} : vector<64x32xf32> to vector<16x32xf32>
    %30 = vector.extract_strided_slice %28 {offsets = [16, 0], sizes = [16, 32], strides = [1, 1]} : vector<64x32xf32> to vector<16x32xf32>
    %31 = arith.addf %29, %30 : vector<16x32xf32>
    %32 = vector.extract_strided_slice %28 {offsets = [32, 0], sizes = [16, 32], strides = [1, 1]} : vector<64x32xf32> to vector<16x32xf32>
    %33 = arith.addf %31, %32 : vector<16x32xf32>
    %34 = vector.extract_strided_slice %28 {offsets = [48, 0], sizes = [16, 32], strides = [1, 1]} : vector<64x32xf32> to vector<16x32xf32>
    %35 = arith.addf %33, %34 : vector<16x32xf32>
    %c160 = arith.constant 160 : index
    %c0_13 = arith.constant 0 : index
    %36 = vector.load %arg3[%c160, %c0_13] : memref<464x96xf32, #tpu.memory_space<vmem>>, vector<32x32xf32>
    %cst_14 = arith.constant dense<0.000000e+00> : vector<16x32xf32>
    %37 = tpu.matmul %35, %36, %cst_14 {dimension_numbers = #tpu.dot_dimension_numbers<[1], [0], [0], [1], [0, 0, 1, 1], [], []>} : vector<16x32xf32>, vector<32x32xf32>, vector<16x32xf32> -> vector<16x32xf32>
    %c257 = arith.constant 257 : index
    %c0_15 = arith.constant 0 : index
    %38 = vector.load %arg3[%c257, %c0_15] : memref<464x96xf32, #tpu.memory_space<vmem>>, vector<1x32xf32>
    %39 = vector.broadcast %38 : vector<1x32xf32> to vector<16x32xf32>
    %40 = arith.addf %37, %39 : vector<16x32xf32>
    %41 = arith.addf %0, %40 : vector<16x32xf32>
    %c258 = arith.constant 258 : index
    %c0_16 = arith.constant 0 : index
    %42 = vector.load %arg3[%c258, %c0_16] : memref<464x96xf32, #tpu.memory_space<vmem>>, vector<1x32xf32>
    %c259 = arith.constant 259 : index
    %c0_17 = arith.constant 0 : index
    %43 = vector.load %arg3[%c259, %c0_17] : memref<464x96xf32, #tpu.memory_space<vmem>>, vector<1x32xf32>
    %cst_18 = arith.constant dense<0.000000e+00> : vector<16xf32>
    %44 = vector.multi_reduction <add>, %41, %cst_18 [1] : vector<16x32xf32> to vector<16xf32>
    %45 = vector.shape_cast %44 : vector<16xf32> to vector<16x1xf32>
    %cst_19 = arith.constant 3.200000e+01 : f32
    %46 = vector.broadcast %cst_19 : f32 to vector<16x1xf32>
    %47 = arith.divf %45, %46 : vector<16x1xf32>
    %48 = vector.broadcast %47 : vector<16x1xf32> to vector<16x32xf32>
    %49 = arith.subf %41, %48 : vector<16x32xf32>
    %50 = arith.mulf %49, %49 : vector<16x32xf32>
    %cst_20 = arith.constant dense<0.000000e+00> : vector<16xf32>
    %51 = vector.multi_reduction <add>, %50, %cst_20 [1] : vector<16x32xf32> to vector<16xf32>
    %52 = vector.shape_cast %51 : vector<16xf32> to vector<16x1xf32>
    %cst_21 = arith.constant 3.200000e+01 : f32
    %53 = vector.broadcast %cst_21 : f32 to vector<16x1xf32>
    %54 = arith.divf %52, %53 : vector<16x1xf32>
    %55 = vector.broadcast %47 : vector<16x1xf32> to vector<16x32xf32>
    %56 = arith.subf %41, %55 : vector<16x32xf32>
    %cst_22 = arith.constant 9.99999974E-6 : f32
    %57 = vector.broadcast %cst_22 : f32 to vector<16x1xf32>
    %58 = arith.addf %54, %57 : vector<16x1xf32>
    %59 = math.rsqrt %58 : vector<16x1xf32>
    %60 = vector.broadcast %59 : vector<16x1xf32> to vector<16x32xf32>
    %61 = arith.mulf %56, %60 : vector<16x32xf32>
    %62 = vector.broadcast %42 : vector<1x32xf32> to vector<16x32xf32>
    %63 = arith.mulf %61, %62 : vector<16x32xf32>
    %64 = vector.broadcast %43 : vector<1x32xf32> to vector<16x32xf32>
    %65 = arith.addf %63, %64 : vector<16x32xf32>
    %c192 = arith.constant 192 : index
    %c0_23 = arith.constant 0 : index
    %66 = vector.load %arg3[%c192, %c0_23] : memref<464x96xf32, #tpu.memory_space<vmem>>, vector<32x32xf32>
    %cst_24 = arith.constant dense<0.000000e+00> : vector<16x32xf32>
    %67 = tpu.matmul %65, %66, %cst_24 {dimension_numbers = #tpu.dot_dimension_numbers<[1], [0], [0], [1], [0, 0, 1, 1], [], []>} : vector<16x32xf32>, vector<32x32xf32>, vector<16x32xf32> -> vector<16x32xf32>
    %c260 = arith.constant 260 : index
    %c0_25 = arith.constant 0 : index
    %68 = vector.load %arg3[%c260, %c0_25] : memref<464x96xf32, #tpu.memory_space<vmem>>, vector<1x32xf32>
    %69 = vector.broadcast %68 : vector<1x32xf32> to vector<16x32xf32>
    %70 = arith.addf %67, %69 : vector<16x32xf32>
    %c32 = arith.constant 32 : index
    %c0_26 = arith.constant 0 : index
    %71 = vector.load %arg3[%c32, %c0_26] : memref<464x96xf32, #tpu.memory_space<vmem>>, vector<32x64xf32>
    %cst_27 = arith.constant dense<0.000000e+00> : vector<24x64xf32>
    %72 = tpu.matmul %1, %71, %cst_27 {dimension_numbers = #tpu.dot_dimension_numbers<[1], [0], [0], [1], [0, 0, 1, 1], [], []>} : vector<24x32xf32>, vector<32x64xf32>, vector<24x64xf32> -> vector<24x64xf32>
    %c261 = arith.constant 261 : index
    %c0_28 = arith.constant 0 : index
    %73 = vector.load %arg3[%c261, %c0_28] : memref<464x96xf32, #tpu.memory_space<vmem>>, vector<1x64xf32>
    %74 = vector.broadcast %73 : vector<1x64xf32> to vector<24x64xf32>
    %75 = arith.addf %72, %74 : vector<24x64xf32>
    %c400 = arith.constant 400 : index
    %c0_29 = arith.constant 0 : index
    %76 = vector.load %arg3[%c400, %c0_29] : memref<464x96xf32, #tpu.memory_space<vmem>>, vector<64x24xf32>
    %77 = vector.extract_strided_slice %75 {offsets = [0, 0], sizes = [24, 32], strides = [1, 1]} : vector<24x64xf32> to vector<24x32xf32>
    %78 = vector.extract_strided_slice %75 {offsets = [0, 32], sizes = [24, 32], strides = [1, 1]} : vector<24x64xf32> to vector<24x32xf32>
    %79 = tpu.concatenate %70, %70, %70, %70 in 0 : vector<16x32xf32>, vector<16x32xf32>, vector<16x32xf32>, vector<16x32xf32> -> vector<64x32xf32>
    %80 = arith.mulf %79, %2 : vector<64x32xf32>
    "tpu.trace_start"() <{level = 10 : i32, message = "rc,kc->rk"}> : () -> ()
    %cst_30 = arith.constant dense<0.000000e+00> : vector<64x24xf32>
    %81 = tpu.matmul %80, %77, %cst_30 {dimension_numbers = #tpu.dot_dimension_numbers<[1], [1], [0], [0], [0, 0, 1, 0], [], []>} : vector<64x32xf32>, vector<24x32xf32>, vector<64x24xf32> -> vector<64x24xf32>
    "tpu.trace_stop"() : () -> ()
    %82 = arith.addf %81, %76 : vector<64x24xf32>
    %cst_31 = arith.constant dense<0xFF800000> : vector<64xf32>
    %83 = vector.multi_reduction <maximumf>, %82, %cst_31 [1] : vector<64x24xf32> to vector<64xf32>
    %84 = vector.shape_cast %83 : vector<64xf32> to vector<64x1xf32>
    %85 = vector.broadcast %84 : vector<64x1xf32> to vector<64x24xf32>
    %86 = arith.subf %82, %85 : vector<64x24xf32>
    %87 = math.exp %86 : vector<64x24xf32>
    %cst_32 = arith.constant dense<0.000000e+00> : vector<64xf32>
    %88 = vector.multi_reduction <add>, %87, %cst_32 [1] : vector<64x24xf32> to vector<64xf32>
    %89 = vector.shape_cast %88 : vector<64xf32> to vector<64x1xf32>
    %cst_33 = arith.constant 1.000000e+00 : f32
    %90 = vector.broadcast %cst_33 : f32 to vector<64x1xf32>
    %91 = arith.divf %90, %89 : vector<64x1xf32>
    %92 = vector.broadcast %91 : vector<64x1xf32> to vector<64x24xf32>
    %93 = arith.mulf %87, %92 : vector<64x24xf32>
    %cst_34 = arith.constant dense<0.000000e+00> : vector<64x32xf32>
    %94 = tpu.matmul %93, %78, %cst_34 {dimension_numbers = #tpu.dot_dimension_numbers<[1], [0], [0], [1], [0, 0, 1, 1], [], []>} : vector<64x24xf32>, vector<24x32xf32>, vector<64x32xf32> -> vector<64x32xf32>
    %95 = arith.mulf %94, %2 : vector<64x32xf32>
    %96 = vector.extract_strided_slice %95 {offsets = [0, 0], sizes = [16, 32], strides = [1, 1]} : vector<64x32xf32> to vector<16x32xf32>
    %97 = vector.extract_strided_slice %95 {offsets = [16, 0], sizes = [16, 32], strides = [1, 1]} : vector<64x32xf32> to vector<16x32xf32>
    %98 = arith.addf %96, %97 : vector<16x32xf32>
    %99 = vector.extract_strided_slice %95 {offsets = [32, 0], sizes = [16, 32], strides = [1, 1]} : vector<64x32xf32> to vector<16x32xf32>
    %100 = arith.addf %98, %99 : vector<16x32xf32>
    %101 = vector.extract_strided_slice %95 {offsets = [48, 0], sizes = [16, 32], strides = [1, 1]} : vector<64x32xf32> to vector<16x32xf32>
    %102 = arith.addf %100, %101 : vector<16x32xf32>
    %c224 = arith.constant 224 : index
    %c0_35 = arith.constant 0 : index
    %103 = vector.load %arg3[%c224, %c0_35] : memref<464x96xf32, #tpu.memory_space<vmem>>, vector<32x32xf32>
    %cst_36 = arith.constant dense<0.000000e+00> : vector<16x32xf32>
    %104 = tpu.matmul %102, %103, %cst_36 {dimension_numbers = #tpu.dot_dimension_numbers<[1], [0], [0], [1], [0, 0, 1, 1], [], []>} : vector<16x32xf32>, vector<32x32xf32>, vector<16x32xf32> -> vector<16x32xf32>
    %c262 = arith.constant 262 : index
    %c0_37 = arith.constant 0 : index
    %105 = vector.load %arg3[%c262, %c0_37] : memref<464x96xf32, #tpu.memory_space<vmem>>, vector<1x32xf32>
    %106 = vector.broadcast %105 : vector<1x32xf32> to vector<16x32xf32>
    %107 = arith.addf %104, %106 : vector<16x32xf32>
    %108 = arith.addf %65, %107 : vector<16x32xf32>
    %c263 = arith.constant 263 : index
    %c0_38 = arith.constant 0 : index
    %109 = vector.load %arg3[%c263, %c0_38] : memref<464x96xf32, #tpu.memory_space<vmem>>, vector<1x32xf32>
    %c264 = arith.constant 264 : index
    %c0_39 = arith.constant 0 : index
    %110 = vector.load %arg3[%c264, %c0_39] : memref<464x96xf32, #tpu.memory_space<vmem>>, vector<1x32xf32>
    %cst_40 = arith.constant dense<0.000000e+00> : vector<16xf32>
    %111 = vector.multi_reduction <add>, %108, %cst_40 [1] : vector<16x32xf32> to vector<16xf32>
    %112 = vector.shape_cast %111 : vector<16xf32> to vector<16x1xf32>
    %cst_41 = arith.constant 3.200000e+01 : f32
    %113 = vector.broadcast %cst_41 : f32 to vector<16x1xf32>
    %114 = arith.divf %112, %113 : vector<16x1xf32>
    %115 = vector.broadcast %114 : vector<16x1xf32> to vector<16x32xf32>
    %116 = arith.subf %108, %115 : vector<16x32xf32>
    %117 = arith.mulf %116, %116 : vector<16x32xf32>
    %cst_42 = arith.constant dense<0.000000e+00> : vector<16xf32>
    %118 = vector.multi_reduction <add>, %117, %cst_42 [1] : vector<16x32xf32> to vector<16xf32>
    %119 = vector.shape_cast %118 : vector<16xf32> to vector<16x1xf32>
    %cst_43 = arith.constant 3.200000e+01 : f32
    %120 = vector.broadcast %cst_43 : f32 to vector<16x1xf32>
    %121 = arith.divf %119, %120 : vector<16x1xf32>
    %122 = vector.broadcast %114 : vector<16x1xf32> to vector<16x32xf32>
    %123 = arith.subf %108, %122 : vector<16x32xf32>
    %cst_44 = arith.constant 9.99999974E-6 : f32
    %124 = vector.broadcast %cst_44 : f32 to vector<16x1xf32>
    %125 = arith.addf %121, %124 : vector<16x1xf32>
    %126 = math.rsqrt %125 : vector<16x1xf32>
    %127 = vector.broadcast %126 : vector<16x1xf32> to vector<16x32xf32>
    %128 = arith.mulf %123, %127 : vector<16x32xf32>
    %129 = vector.broadcast %109 : vector<1x32xf32> to vector<16x32xf32>
    %130 = arith.mulf %128, %129 : vector<16x32xf32>
    %131 = vector.broadcast %110 : vector<1x32xf32> to vector<16x32xf32>
    %132 = arith.addf %130, %131 : vector<16x32xf32>
    %c64 = arith.constant 64 : index
    %c0_45 = arith.constant 0 : index
    %133 = vector.load %arg3[%c64, %c0_45] : memref<464x96xf32, #tpu.memory_space<vmem>>, vector<32x64xf32>
    %cst_46 = arith.constant dense<0.000000e+00> : vector<16x64xf32>
    %134 = tpu.matmul %132, %133, %cst_46 {dimension_numbers = #tpu.dot_dimension_numbers<[1], [0], [0], [1], [0, 0, 1, 1], [], []>} : vector<16x32xf32>, vector<32x64xf32>, vector<16x64xf32> -> vector<16x64xf32>
    %c265 = arith.constant 265 : index
    %c0_47 = arith.constant 0 : index
    %135 = vector.load %arg3[%c265, %c0_47] : memref<464x96xf32, #tpu.memory_space<vmem>>, vector<1x64xf32>
    %136 = vector.broadcast %135 : vector<1x64xf32> to vector<16x64xf32>
    %137 = arith.addf %134, %136 : vector<16x64xf32>
    %cst_48 = arith.constant 0.000000e+00 : f32
    %138 = vector.broadcast %cst_48 : f32 to vector<16x64xf32>
    %139 = arith.maximumf %137, %138 : vector<16x64xf32>
    %c96 = arith.constant 96 : index
    %c0_49 = arith.constant 0 : index
    %140 = vector.load %arg3[%c96, %c0_49] : memref<464x96xf32, #tpu.memory_space<vmem>>, vector<64x32xf32>
    %cst_50 = arith.constant dense<0.000000e+00> : vector<16x32xf32>
    %141 = tpu.matmul %139, %140, %cst_50 {dimension_numbers = #tpu.dot_dimension_numbers<[1], [0], [0], [1], [0, 0, 1, 1], [], []>} : vector<16x64xf32>, vector<64x32xf32>, vector<16x32xf32> -> vector<16x32xf32>
    %c266 = arith.constant 266 : index
    %c0_51 = arith.constant 0 : index
    %142 = vector.load %arg3[%c266, %c0_51] : memref<464x96xf32, #tpu.memory_space<vmem>>, vector<1x32xf32>
    %143 = vector.broadcast %142 : vector<1x32xf32> to vector<16x32xf32>
    %144 = arith.addf %141, %143 : vector<16x32xf32>
    %145 = arith.addf %132, %144 : vector<16x32xf32>
    %c267 = arith.constant 267 : index
    %c0_52 = arith.constant 0 : index
    %146 = vector.load %arg3[%c267, %c0_52] : memref<464x96xf32, #tpu.memory_space<vmem>>, vector<1x32xf32>
    %c268 = arith.constant 268 : index
    %c0_53 = arith.constant 0 : index
    %147 = vector.load %arg3[%c268, %c0_53] : memref<464x96xf32, #tpu.memory_space<vmem>>, vector<1x32xf32>
    %cst_54 = arith.constant dense<0.000000e+00> : vector<16xf32>
    %148 = vector.multi_reduction <add>, %145, %cst_54 [1] : vector<16x32xf32> to vector<16xf32>
    %149 = vector.shape_cast %148 : vector<16xf32> to vector<16x1xf32>
    %cst_55 = arith.constant 3.200000e+01 : f32
    %150 = vector.broadcast %cst_55 : f32 to vector<16x1xf32>
    %151 = arith.divf %149, %150 : vector<16x1xf32>
    %152 = vector.broadcast %151 : vector<16x1xf32> to vector<16x32xf32>
    %153 = arith.subf %145, %152 : vector<16x32xf32>
    %154 = arith.mulf %153, %153 : vector<16x32xf32>
    %cst_56 = arith.constant dense<0.000000e+00> : vector<16xf32>
    %155 = vector.multi_reduction <add>, %154, %cst_56 [1] : vector<16x32xf32> to vector<16xf32>
    %156 = vector.shape_cast %155 : vector<16xf32> to vector<16x1xf32>
    %cst_57 = arith.constant 3.200000e+01 : f32
    %157 = vector.broadcast %cst_57 : f32 to vector<16x1xf32>
    %158 = arith.divf %156, %157 : vector<16x1xf32>
    %159 = vector.broadcast %151 : vector<16x1xf32> to vector<16x32xf32>
    %160 = arith.subf %145, %159 : vector<16x32xf32>
    %cst_58 = arith.constant 9.99999974E-6 : f32
    %161 = vector.broadcast %cst_58 : f32 to vector<16x1xf32>
    %162 = arith.addf %158, %161 : vector<16x1xf32>
    %163 = math.rsqrt %162 : vector<16x1xf32>
    %164 = vector.broadcast %163 : vector<16x1xf32> to vector<16x32xf32>
    %165 = arith.mulf %160, %164 : vector<16x32xf32>
    %166 = vector.broadcast %146 : vector<1x32xf32> to vector<16x32xf32>
    %167 = arith.mulf %165, %166 : vector<16x32xf32>
    %168 = vector.broadcast %147 : vector<1x32xf32> to vector<16x32xf32>
    %169 = arith.addf %167, %168 : vector<16x32xf32>
    %c0_59 = arith.constant 0 : index
    %c0_60 = arith.constant 0 : index
    %170 = vector.load %arg4[%c0_59, %c0_60] : memref<16x32xf32, #tpu.memory_space<vmem>>, vector<16x32xf32>
    tpu.vector_store %arg4[%c0_59, %c0_60], %169 {strides = array<i32>} : memref<16x32xf32, #tpu.memory_space<vmem>>, vector<16x32xf32>,
    return
  }
  func.func @transform_0(%arg0: i32) -> (i32, i32) {
    %c0_i32 = arith.constant 0 : i32
    %c0_i32_0 = arith.constant 0 : i32
    %c0_i32_1 = arith.constant 0 : i32
    return %c0_i32, %c0_i32_0 : i32, i32
  }
  func.func @transform_1(%arg0: i32) -> (i32, i32) {
    %c0_i32 = arith.constant 0 : i32
    %c0_i32_0 = arith.constant 0 : i32
    %c0_i32_1 = arith.constant 0 : i32
    return %c0_i32, %c0_i32_0 : i32, i32
  }
  func.func @transform_2(%arg0: i32) -> (i32, i32) {
    %c0_i32 = arith.constant 0 : i32
    %c0_i32_0 = arith.constant 0 : i32
    %c0_i32_1 = arith.constant 0 : i32
    return %c0_i32, %c0_i32_0 : i32, i32
  }
  func.func @transform_3(%arg0: i32) -> (i32, i32) {
    %c0_i32 = arith.constant 0 : i32
    %c0_i32_0 = arith.constant 0 : i32
    %c0_i32_1 = arith.constant 0 : i32
    return %c0_i32, %c0_i32_0 : i32, i32
  }
}

</mosaic_0001>

<llo_original>
// kernel: tpu_custom_call.1
$region0: #{tpu_custom_call.1}
  #allocation0 [shape = 'u32[]', space=smem, size = 0x4, offset = 0x4, fixed_abs, tag = 'smem constant byte address 0x4 - core index']
  #allocation1 [shape = 'u32[144,128]{1,0:T(1,128)}', space=vmem, size = 0x12000, scoped, tag = 'internal scratch']
  %s0 = inlined_call_operand.vmem [shape: f32[24,32], index: 0, kind: input, shape index: {}]
  %s1 = inlined_call_operand.vmem [shape: f32[16,32], index: 1, kind: input, shape index: {}]
  %s2 = inlined_call_operand.vmem [shape: f32[464,96], index: 2, kind: input, shape index: {}]
  %s3 = inlined_call_operand.hbm [shape: f32[16,32], index: 3, kind: output, shape index: {}]
  %s4 = sld [smem:[#allocation0]]
  $region22: #{tpu_custom_call.1} parent=0
    _
  %s6 = ssub.s32 1, %s4
  %s7 = scalar_select 0, %s6, %s4
  $region1: #{tpu_custom_call.1} parent=0
    #allocation2 [shape = 'u8[8192]{0}', space=vmem, size = 0x2000, scoped, tag = 'output window, operand 0, single buffered']
    #allocation3 [shape = 's32[1]{0}', space=sflag, size = 0x4, scoped, tag = 'scoped memory for tpu_custom_call.1']
    %8 = vsyncpa [#allocation3], 0
    // Predicated region
    $region2: #{tpu_custom_call.1} parent=1 // pred_check
      _
    $region3: #{tpu_custom_call.1} parent=1 // pred_check_branch
      %10 = sbr.rel (0) target = $region5
    $region4: #{tpu_custom_call.1} parent=1 // pred_region
      _
    $region5: #{tpu_custom_call.1} parent=1 // pred_fallthru
      _
    // Predicated region
    $region6: #{tpu_custom_call.1} parent=1 // pred_check
      _
    $region7: #{tpu_custom_call.1} parent=1 // pred_check_branch
      %12 = sbr.rel (0) target = $region9
    $region8: #{tpu_custom_call.1} parent=1 // pred_region
      _
    $region9: #{tpu_custom_call.1} parent=1 // pred_fallthru
      _
    // Predicated region
    $region10: #{tpu_custom_call.1} parent=1 // pred_check
      _
    $region11: #{tpu_custom_call.1} parent=1 // pred_check_branch
      %14 = sbr.rel (0) target = $region13
    $region12: #{tpu_custom_call.1} parent=1 // pred_region
      _
    $region13: #{tpu_custom_call.1} parent=1 // pred_fallthru
      _
    %v15 = vld [vmem:[%s1] sm:$0xff]
    %v16 = vld [vmem:[%s1 + $0x8] sm:$0xff]
    %v17 = vld [vmem:[%s0] sm:$0xff]
    %v18 = vld [vmem:[%s0 + $0x8] sm:$0xff]
    %v19 = vld [vmem:[%s0 + $0x10] sm:$0xff]
    %v20 = vld [vmem:[%s2 + $0x110] sm:$0xff]
    %v21 = vld [vmem:[%s2 + $0x118] sm:$0xff]
    %v22 = vld [vmem:[%s2 + $0x120] sm:$0xff]
    %v23 = vld [vmem:[%s2 + $0x128] sm:$0xff]
    %v24 = vld [vmem:[%s2 + $0x130] sm:$0xff]
    %v25 = vld [vmem:[%s2 + $0x138] sm:$0xff]
    %v26 = vld [vmem:[%s2 + $0x140] sm:$0xff]
    %v27 = vld [vmem:[%s2 + $0x148] sm:$0xff]
    %v28 = vld [vmem:[%s2] sm:$0xff]
    %v29 = vld [vmem:[%s2 + $0x8] sm:$0xff]
    %v30 = vld [vmem:[%s2 + $0x10] sm:$0xff]
    %v31 = vld [vmem:[%s2 + $0x18] sm:$0xff]
    %v32 = vld [vmem:[%s2 + $0x100] sm:$0x1]
    %v33 = vlaneseq
    %v34 = vshrl.u32 %v33, 7
    %v35 = vsub.s32 0, %v34
    %v36 = vrot.slane %v32, %v35
    %vm37 = vcmask 261120
    %v39 = vsel %vm37, %v15, 0
    %v42 = vsel %vm37, %v16, 0
    %44 = vmatprep.subr.mxu0 0.0
    %45 = vmatpush1.msra.mxu0 %v28
    %46 = vmatprep.subr.mxu0 0.0
    %47 = vmatpush1.msra.mxu0 %v29
    %48 = vmatprep.subr.mxu0 0.0
    %49 = vmatpush1.msra.mxu0 %v30
    %50 = vmatprep.subr.mxu0 0.0
    %51 = vmatpush1.msra.mxu0 %v31
    %52 = vmatprep.subr.mxu0 0.0
    %53 = vmatpush1.msra.mxu0 0.0
    %54 = vmatprep.subr.mxu0 0.0
    %55 = vmatpush1.msra.mxu0 0.0
    %56 = vmatprep.subr.mxu0 0.0
    %57 = vmatpush1.msra.mxu0 0.0
    %58 = vmatprep.subr.mxu0 0.0
    %59 = vmatpush1.msra.mxu0 0.0
    %60 = vmatprep.subr.mxu0 0.0
    %61 = vmatpush1.msra.mxu0 0.0
    %62 = vmatprep.subr.mxu0 0.0
    %63 = vmatpush1.msra.mxu0 0.0
    %64 = vmatprep.subr.mxu0 0.0
    %65 = vmatpush1.msra.mxu0 0.0
    %66 = vmatprep.subr.mxu0 0.0
    %67 = vmatpush1.msra.mxu0 0.0
    %68 = vmatprep.subr.mxu0 0.0
    %69 = vmatpush1.msra.mxu0 0.0
    %70 = vmatprep.subr.mxu0 0.0
    %71 = vmatpush1.msra.mxu0 0.0
    %72 = vmatprep.subr.mxu0 0.0
    %73 = vmatpush1.msra.mxu0 0.0
    %74 = vmatprep.subr.mxu0 0.0
    %75 = vmatpush1.msra.mxu0 0.0
    %76 = vmatprep.subr.mxu0 0.0
    %77 = vmatpush1.msra.mxu0 0.0
    %78 = vmatprep.subr.mxu0 0.0
    %79 = vmatpush1.msra.mxu0 0.0
    %80 = vmatprep.subr.mxu0 0.0
    %81 = vmatpush1.msra.mxu0 0.0
    %82 = vmatprep.subr.mxu0 0.0
    %83 = vmatpush1.msra.mxu0 0.0
    %84 = vmatprep.subr.mxu0 0.0
    %85 = vmatpush1.msra.mxu0 0.0
    %86 = vmatprep.subr.mxu0 0.0
    %87 = vmatpush1.msra.mxu0 0.0
    %88 = vmatprep.subr.mxu0 0.0
    %89 = vmatpush1.msra.mxu0 0.0
    %90 = vmatprep.subr.mxu0 0.0
    %91 = vmatpush1.msra.mxu0 0.0
    %92 = vmatprep.subr.mxu0 0.0
    %93 = vmatpush1.msra.mxu0 0.0
    %94 = vmatprep.subr.mxu0 0.0
    %95 = vmatpush1.msra.mxu0 0.0
    %96 = vmatprep.subr.mxu0 0.0
    %97 = vmatpush1.msra.mxu0 0.0
    %98 = vmatprep.subr.mxu0 0.0
    %99 = vmatpush1.msra.mxu0 0.0
    %100 = vmatprep.subr.mxu0 0.0
    %101 = vmatpush1.msra.mxu0 0.0
    %102 = vmatprep.subr.mxu0 0.0
    %103 = vmatpush1.msra.mxu0 0.0
    %104 = vmatprep.subr.mxu0 0.0
    %105 = vmatpush1.msra.mxu0 0.0
    %106 = vmatprep.subr.mxu0 0.0
    %107 = vmatpush1.msra.mxu0 0.0
    %108 = vmatprep.mubr.f32.mxu0 0.0
    %109 = vmatmul.mubr.f32.gmra.mrb[0].mxu0 %v39
    %v110 = vpop.f32.mrb[0].mxu0
    %v111 = vadd.f32 %v36, %v110
    %v112 = vpop.f32.mrb[0].mxu0
    %113 = vmatprep.mubr.f32.mxu0 0.0
    %114 = vmatmul.mubr.f32.gmra.mrb[0].mxu0 %v42
    %v115 = vpop.f32.mrb[0].mxu0
    %v116 = vadd.f32 %v36, %v115
    %v117 = vpop.f32.mrb[0].mxu0
    %118 = vdwg.mxu0
    %v119 = vld [vmem:[%s2 + $0x150] sm:$0xff]
    %v120 = vld [vmem:[%s2 + $0x158] sm:$0xff]
    %v121 = vld [vmem:[%s2 + $0x160] sm:$0xff]
    %v122 = vld [vmem:[%s2 + $0x168] sm:$0xff]
    %v123 = vld [vmem:[%s2 + $0x170] sm:$0xff]
    %v124 = vld [vmem:[%s2 + $0x178] sm:$0xff]
    %v125 = vld [vmem:[%s2 + $0x180] sm:$0xff]
    %v126 = vld [vmem:[%s2 + $0x188] sm:$0xff]
    %v127 = vmul.f32 %v111, %v20
    %v128 = vmul.f32 %v116, %v21
    %v129 = vmul.f32 %v111, %v22
    %v130 = vmul.f32 %v116, %v23
    %v131 = vmul.f32 %v111, %v24
    %v132 = vmul.f32 %v116, %v25
    %v133 = vmul.f32 %v111, %v26
    %v134 = vmul.f32 %v116, %v27
    %137 = vrot.lane.b32.xlu0 %v111, 96
    %v138 = vpop.permute.xlu0 %137
    %139 = vrot.lane.b32.xlu0 %v116, 96
    %v140 = vpop.permute.xlu0 %139
    %v142 = vsel %vm37, %v127, 0
    %v145 = vsel %vm37, %v128, 0
    %v148 = vsel %vm37, %v129, 0
    %v151 = vsel %vm37, %v130, 0
    %v154 = vsel %vm37, %v131, 0
    %v157 = vsel %vm37, %v132, 0
    %v160 = vsel %vm37, %v133, 0
    %v163 = vsel %vm37, %v134, 0
    %v165 = vsel %vm37, %v138, 0
    %v167 = vsel %vm37, %v140, 0
    %169 = vmatprep.subr.mxu0 0.0
    %170 = vmatpush1.xpose.msra.mxu0 %v165
    %171 = vmatprep.subr.mxu0 0.0
    %172 = vmatpush1.xpose.msra.mxu0 %v167
    %173 = vmatprep.subr.mxu0 0.0
    %174 = vmatpush1.xpose.msra.mxu0 0.0
    %175 = vmatprep.subr.mxu0 0.0
    %176 = vmatpush1.xpose.msra.mxu0 0.0
    %177 = vmatprep.subr.mxu0 0.0
    %178 = vmatpush1.xpose.msra.mxu0 0.0
    %179 = vmatprep.subr.mxu0 0.0
    %180 = vmatpush1.xpose.msra.mxu0 0.0
    %181 = vmatprep.subr.mxu0 0.0
    %182 = vmatpush1.xpose.msra.mxu0 0.0
    %183 = vmatprep.subr.mxu0 0.0
    %184 = vmatpush1.xpose.msra.mxu0 0.0
    %185 = vmatprep.subr.mxu0 0.0
    %186 = vmatpush1.xpose.msra.mxu0 0.0
    %187 = vmatprep.subr.mxu0 0.0
    %188 = vmatpush1.xpose.msra.mxu0 0.0
    %189 = vmatprep.subr.mxu0 0.0
    %190 = vmatpush1.xpose.msra.mxu0 0.0
    %191 = vmatprep.subr.mxu0 0.0
    %192 = vmatpush1.xpose.msra.mxu0 0.0
    %193 = vmatprep.subr.mxu0 0.0
    %194 = vmatpush1.xpose.msra.mxu0 0.0
    %195 = vmatprep.subr.mxu0 0.0
    %196 = vmatpush1.xpose.msra.mxu0 0.0
    %197 = vmatprep.subr.mxu0 0.0
    %198 = vmatpush1.xpose.msra.mxu0 0.0
    %199 = vmatprep.subr.mxu0 0.0
    %200 = vmatpush1.xpose.msra.mxu0 0.0
    %201 = vmatprep.subr.mxu0 0.0
    %202 = vmatpush1.xpose.msra.mxu0 0.0
    %203 = vmatprep.subr.mxu0 0.0
    %204 = vmatpush1.xpose.msra.mxu0 0.0
    %205 = vmatprep.subr.mxu0 0.0
    %206 = vmatpush1.xpose.msra.mxu0 0.0
    %207 = vmatprep.subr.mxu0 0.0
    %208 = vmatpush1.xpose.msra.mxu0 0.0
    %209 = vmatprep.subr.mxu0 0.0
    %210 = vmatpush1.xpose.msra.mxu0 0.0
    %211 = vmatprep.subr.mxu0 0.0
    %212 = vmatpush1.xpose.msra.mxu0 0.0
    %213 = vmatprep.subr.mxu0 0.0
    %214 = vmatpush1.xpose.msra.mxu0 0.0
    %215 = vmatprep.subr.mxu0 0.0
    %216 = vmatpush1.xpose.msra.mxu0 0.0
    %217 = vmatprep.subr.mxu0 0.0
    %218 = vmatpush1.xpose.msra.mxu0 0.0
    %219 = vmatprep.subr.mxu0 0.0
    %220 = vmatpush1.xpose.msra.mxu0 0.0
    %221 = vmatprep.subr.mxu0 0.0
    %222 = vmatpush1.xpose.msra.mxu0 0.0
    %223 = vmatprep.subr.mxu0 0.0
    %224 = vmatpush1.xpose.msra.mxu0 0.0
    %225 = vmatprep.subr.mxu0 0.0
    %226 = vmatpush1.xpose.msra.mxu0 0.0
    %227 = vmatprep.subr.mxu0 0.0
    %228 = vmatpush1.xpose.msra.mxu0 0.0
    %229 = vmatprep.subr.mxu0 0.0
    %230 = vmatpush1.xpose.msra.mxu0 0.0
    %231 = vmatprep.subr.mxu0 0.0
    %232 = vmatpush1.xpose.msra.mxu0 0.0
    %233 = vmatprep.mubr.f32.mxu0 0.0
    %234 = vmatmul.mubr.f32.gmra.mrb[0].mxu0 %v142
    %v235 = vpop.f32.mrb[0].mxu0
    %v236 = vadd.f32 %v119, %v235
    %v237 = vpop.f32.mrb[0].mxu0
    %238 = vmatprep.mubr.f32.mxu0 0.0
    %239 = vmatmul.mubr.f32.gmra.mrb[0].mxu0 %v145
    %v240 = vpop.f32.mrb[0].mxu0
    %v241 = vadd.f32 %v120, %v240
    %v242 = vpop.f32.mrb[0].mxu0
    %243 = vmatprep.mubr.f32.mxu0 0.0
    %244 = vmatmul.mubr.f32.gmra.mrb[0].mxu0 %v148
    %v245 = vpop.f32.mrb[0].mxu0
    %v246 = vadd.f32 %v121, %v245
    %v247 = vpop.f32.mrb[0].mxu0
    %248 = vmatprep.mubr.f32.mxu0 0.0
    %249 = vmatmul.mubr.f32.gmra.mrb[0].mxu0 %v151
    %v250 = vpop.f32.mrb[0].mxu0
    %v251 = vadd.f32 %v122, %v250
    %v252 = vpop.f32.mrb[0].mxu0
    %253 = vmatprep.mubr.f32.mxu0 0.0
    %254 = vmatmul.mubr.f32.gmra.mrb[0].mxu0 %v154
    %v255 = vpop.f32.mrb[0].mxu0
    %v256 = vadd.f32 %v123, %v255
    %v257 = vpop.f32.mrb[0].mxu0
    %258 = vmatprep.mubr.f32.mxu0 0.0
    %259 = vmatmul.mubr.f32.gmra.mrb[0].mxu0 %v157
    %v260 = vpop.f32.mrb[0].mxu0
    %v261 = vadd.f32 %v124, %v260
    %v262 = vpop.f32.mrb[0].mxu0
    %263 = vmatprep.mubr.f32.mxu0 0.0
    %264 = vmatmul.mubr.f32.gmra.mrb[0].mxu0 %v160
    %v265 = vpop.f32.mrb[0].mxu0
    %v266 = vadd.f32 %v125, %v265
    %v267 = vpop.f32.mrb[0].mxu0
    %268 = vmatprep.mubr.f32.mxu0 0.0
    %269 = vmatmul.mubr.f32.gmra.mrb[0].mxu0 %v163
    %v270 = vpop.f32.mrb[0].mxu0
    %v271 = vadd.f32 %v126, %v270
    %v272 = vpop.f32.mrb[0].mxu0
    %273 = vdwg.mxu0
    %vm274 = vcmask 130048
    %v275 = vsel %vm274, %v236, -inf
    %276 = vmax.xlane.f32.xlu0 %v275
    %v277 = vpop.xlane.xlu0 %276
    %v278 = vsel %vm274, %v241, -inf
    %279 = vmax.xlane.f32.xlu0 %v278
    %v280 = vpop.xlane.xlu0 %279
    %v281 = vsel %vm274, %v246, -inf
    %282 = vmax.xlane.f32.xlu0 %v281
    %v283 = vpop.xlane.xlu0 %282
    %v284 = vsel %vm274, %v251, -inf
    %285 = vmax.xlane.f32.xlu0 %v284
    %v286 = vpop.xlane.xlu0 %285
    %v287 = vsel %vm274, %v256, -inf
    %288 = vmax.xlane.f32.xlu0 %v287
    %v289 = vpop.xlane.xlu0 %288
    %v290 = vsel %vm274, %v261, -inf
    %291 = vmax.xlane.f32.xlu0 %v290
    %v292 = vpop.xlane.xlu0 %291
    %v293 = vsel %vm274, %v266, -inf
    %294 = vmax.xlane.f32.xlu0 %v293
    %v295 = vpop.xlane.xlu0 %294
    %v296 = vsel %vm274, %v271, -inf
    %297 = vmax.xlane.f32.xlu0 %v296
    %v298 = vpop.xlane.xlu0 %297
    %v299 = vsub.f32 %v236, %v277
    %v300 = vsub.f32 %v241, %v280
    %v301 = vsub.f32 %v246, %v283
    %v302 = vsub.f32 %v251, %v286
    %v303 = vsub.f32 %v256, %v289
    %v304 = vsub.f32 %v261, %v292
    %v305 = vsub.f32 %v266, %v295
    %v306 = vsub.f32 %v271, %v298
    %v307 = vmul.f32 %v299, 1.442695
    %v308 = vpow.pop %v307
    %v309 = vmul.f32 %v300, 1.442695
    %v310 = vpow.pop %v309
    %v311 = vmul.f32 %v301, 1.442695
    %v312 = vpow.pop %v311
    %v313 = vmul.f32 %v302, 1.442695
    %v314 = vpow.pop %v313
    %v315 = vmul.f32 %v303, 1.442695
    %v316 = vpow.pop %v315
    %v317 = vmul.f32 %v304, 1.442695
    %v318 = vpow.pop %v317
    %v319 = vmul.f32 %v305, 1.442695
    %v320 = vpow.pop %v319
    %v321 = vmul.f32 %v306, 1.442695
    %v322 = vpow.pop %v321
    %v323 = vsel %vm274, %v308, 0.0
    %324 = vadd.xlane.f32.xlu0 %v323
    %v325 = vpop.xlane.xlu0 %324
    %v326 = vsel %vm274, %v310, 0.0
    %327 = vadd.xlane.f32.xlu0 %v326
    %v328 = vpop.xlane.xlu0 %327
    %v329 = vsel %vm274, %v312, 0.0
    %330 = vadd.xlane.f32.xlu0 %v329
    %v331 = vpop.xlane.xlu0 %330
    %v332 = vsel %vm274, %v314, 0.0
    %333 = vadd.xlane.f32.xlu0 %v332
    %v334 = vpop.xlane.xlu0 %333
    %v335 = vsel %vm274, %v316, 0.0
    %336 = vadd.xlane.f32.xlu0 %v335
    %v337 = vpop.xlane.xlu0 %336
    %v338 = vsel %vm274, %v318, 0.0
    %339 = vadd.xlane.f32.xlu0 %v338
    %v340 = vpop.xlane.xlu0 %339
    %v341 = vsel %vm274, %v320, 0.0
    %342 = vadd.xlane.f32.xlu0 %v341
    %v343 = vpop.xlane.xlu0 %342
    %v344 = vsel %vm274, %v322, 0.0
    %345 = vadd.xlane.f32.xlu0 %v344
    %v346 = vpop.xlane.xlu0 %345
    %v347 = vrcp.pop %v325
    %v348 = vmul.f32 1.0, %v347
    %v349 = vrcp.pop %v328
    %v350 = vmul.f32 1.0, %v349
    %v351 = vrcp.pop %v331
    %v352 = vmul.f32 1.0, %v351
    %v353 = vrcp.pop %v334
    %v354 = vmul.f32 1.0, %v353
    %v355 = vrcp.pop %v337
    %v356 = vmul.f32 1.0, %v355
    %v357 = vrcp.pop %v340
    %v358 = vmul.f32 1.0, %v357
    %v359 = vrcp.pop %v343
    %v360 = vmul.f32 1.0, %v359
    %v361 = vrcp.pop %v346
    %v362 = vmul.f32 1.0, %v361
    %v363 = vmul.f32 %v308, %v348
    %v364 = vmul.f32 %v310, %v350
    %v365 = vmul.f32 %v312, %v352
    %v366 = vmul.f32 %v314, %v354
    %v367 = vmul.f32 %v316, %v356
    %v368 = vmul.f32 %v318, %v358
    %v369 = vmul.f32 %v320, %v360
    %v370 = vmul.f32 %v322, %v362
    %371 = vrot.lane.b32.xlu0 %v111, 64
    %v372 = vpop.permute.xlu0 %371
    %373 = vrot.lane.b32.xlu0 %v116, 64
    %v374 = vpop.permute.xlu0 %373
    %v378 = vsel %vm274, %v363, 0
    %v381 = vsel %vm274, %v364, 0
    %v384 = vsel %vm274, %v365, 0
    %v387 = vsel %vm274, %v366, 0
    %v390 = vsel %vm274, %v367, 0
    %v393 = vsel %vm274, %v368, 0
    %v396 = vsel %vm274, %v369, 0
    %v399 = vsel %vm274, %v370, 0
    %401 = vmatprep.subr.mxu0 0.0
    %402 = vmatpush1.msra.mxu0 %v372
    %403 = vmatprep.subr.mxu0 0.0
    %404 = vmatpush1.msra.mxu0 %v374
    %405 = vmatprep.subr.mxu0 0.0
    %406 = vmatpush1.msra.mxu0 0.0
    %407 = vmatprep.subr.mxu0 0.0
    %408 = vmatpush1.msra.mxu0 0.0
    %409 = vmatprep.subr.mxu0 0.0
    %410 = vmatpush1.msra.mxu0 0.0
    %411 = vmatprep.subr.mxu0 0.0
    %412 = vmatpush1.msra.mxu0 0.0
    %413 = vmatprep.subr.mxu0 0.0
    %414 = vmatpush1.msra.mxu0 0.0
    %415 = vmatprep.subr.mxu0 0.0
    %416 = vmatpush1.msra.mxu0 0.0
    %417 = vmatprep.subr.mxu0 0.0
    %418 = vmatpush1.msra.mxu0 0.0
    %419 = vmatprep.subr.mxu0 0.0
    %420 = vmatpush1.msra.mxu0 0.0
    %421 = vmatprep.subr.mxu0 0.0
    %422 = vmatpush1.msra.mxu0 0.0
    %423 = vmatprep.subr.mxu0 0.0
    %424 = vmatpush1.msra.mxu0 0.0
    %425 = vmatprep.subr.mxu0 0.0
    %426 = vmatpush1.msra.mxu0 0.0
    %427 = vmatprep.subr.mxu0 0.0
    %428 = vmatpush1.msra.mxu0 0.0
    %429 = vmatprep.subr.mxu0 0.0
    %430 = vmatpush1.msra.mxu0 0.0
    %431 = vmatprep.subr.mxu0 0.0
    %432 = vmatpush1.msra.mxu0 0.0
    %433 = vmatprep.subr.mxu0 0.0
    %434 = vmatpush1.msra.mxu0 0.0
    %435 = vmatprep.subr.mxu0 0.0
    %436 = vmatpush1.msra.mxu0 0.0
    %437 = vmatprep.subr.mxu0 0.0
    %438 = vmatpush1.msra.mxu0 0.0
    %439 = vmatprep.subr.mxu0 0.0
    %440 = vmatpush1.msra.mxu0 0.0
    %441 = vmatprep.subr.mxu0 0.0
    %442 = vmatpush1.msra.mxu0 0.0
    %443 = vmatprep.subr.mxu0 0.0
    %444 = vmatpush1.msra.mxu0 0.0
    %445 = vmatprep.subr.mxu0 0.0
    %446 = vmatpush1.msra.mxu0 0.0
    %447 = vmatprep.subr.mxu0 0.0
    %448 = vmatpush1.msra.mxu0 0.0
    %449 = vmatprep.subr.mxu0 0.0
    %450 = vmatpush1.msra.mxu0 0.0
    %451 = vmatprep.subr.mxu0 0.0
    %452 = vmatpush1.msra.mxu0 0.0
    %453 = vmatprep.subr.mxu0 0.0
    %454 = vmatpush1.msra.mxu0 0.0
    %455 = vmatprep.subr.mxu0 0.0
    %456 = vmatpush1.msra.mxu0 0.0
    %457 = vmatprep.subr.mxu0 0.0
    %458 = vmatpush1.msra.mxu0 0.0
    %459 = vmatprep.subr.mxu0 0.0
    %460 = vmatpush1.msra.mxu0 0.0
    %461 = vmatprep.subr.mxu0 0.0
    %462 = vmatpush1.msra.mxu0 0.0
    %463 = vmatprep.subr.mxu0 0.0
    %464 = vmatpush1.msra.mxu0 0.0
    %465 = vmatprep.mubr.f32.mxu0 0.0
    %466 = vmatmul.mubr.f32.gmra.mrb[0].mxu0 %v378
    %v467 = vpop.f32.mrb[0].mxu0
    %v468 = vadd.f32 0.0, %v467
    %v469 = vpop.f32.mrb[0].mxu0
    %470 = vmatprep.mubr.f32.mxu0 0.0
    %471 = vmatmul.mubr.f32.gmra.mrb[0].mxu0 %v381
    %v472 = vpop.f32.mrb[0].mxu0
    %v473 = vadd.f32 0.0, %v472
    %v474 = vpop.f32.mrb[0].mxu0
    %475 = vmatprep.mubr.f32.mxu0 0.0
    %476 = vmatmul.mubr.f32.gmra.mrb[0].mxu0 %v384
    %v477 = vpop.f32.mrb[0].mxu0
    %v478 = vadd.f32 0.0, %v477
    %v479 = vpop.f32.mrb[0].mxu0
    %480 = vmatprep.mubr.f32.mxu0 0.0
    %481 = vmatmul.mubr.f32.gmra.mrb[0].mxu0 %v387
    %v482 = vpop.f32.mrb[0].mxu0
    %v483 = vadd.f32 0.0, %v482
    %v484 = vpop.f32.mrb[0].mxu0
    %485 = vmatprep.mubr.f32.mxu0 0.0
    %486 = vmatmul.mubr.f32.gmra.mrb[0].mxu0 %v390
    %v487 = vpop.f32.mrb[0].mxu0
    %v488 = vadd.f32 0.0, %v487
    %v489 = vpop.f32.mrb[0].mxu0
    %490 = vmatprep.mubr.f32.mxu0 0.0
    %491 = vmatmul.mubr.f32.gmra.mrb[0].mxu0 %v393
    %v492 = vpop.f32.mrb[0].mxu0
    %v493 = vadd.f32 0.0, %v492
    %v494 = vpop.f32.mrb[0].mxu0
    %495 = vmatprep.mubr.f32.mxu0 0.0
    %496 = vmatmul.mubr.f32.gmra.mrb[0].mxu0 %v396
    %v497 = vpop.f32.mrb[0].mxu0
    %v498 = vadd.f32 0.0, %v497
    %v499 = vpop.f32.mrb[0].mxu0
    %500 = vmatprep.mubr.f32.mxu0 0.0
    %501 = vmatmul.mubr.f32.gmra.mrb[0].mxu0 %v399
    %v502 = vpop.f32.mrb[0].mxu0
    %v503 = vadd.f32 0.0, %v502
    %v504 = vpop.f32.mrb[0].mxu0
    %505 = vdwg.mxu0
    %v506 = vmul.f32 %v468, %v20
    %v507 = vmul.f32 %v473, %v21
    %v508 = vmul.f32 %v478, %v22
    %v509 = vmul.f32 %v483, %v23
    %v510 = vmul.f32 %v488, %v24
    %v511 = vmul.f32 %v493, %v25
    %v512 = vmul.f32 %v498, %v26
    %v513 = vmul.f32 %v503, %v27
    %v514 = vadd.f32 %v506, %v508
    %v515 = vadd.f32 %v507, %v509
    %v516 = vadd.f32 %v514, %v510
    %v517 = vadd.f32 %v515, %v511
    %v518 = vadd.f32 %v516, %v512
    %v519 = vadd.f32 %v517, %v513
    %v520 = vld [vmem:[%s2 + $0xa0] sm:$0xff]
    %v521 = vld [vmem:[%s2 + $0xa8] sm:$0xff]
    %v522 = vld [vmem:[%s2 + $0xb0] sm:$0xff]
    %v523 = vld [vmem:[%s2 + $0xb8] sm:$0xff]
    %v524 = vld [vmem:[%s2 + $0x101] sm:$0x1]
    %v525 = vlaneseq
    %v526 = vshrl.u32 %v525, 7
    %v527 = vsub.s32 0, %v526
    %v528 = vrot.slane %v524, %v527
    %v530 = vsel %vm37, %v518, 0
    %v533 = vsel %vm37, %v519, 0
    %535 = vmatprep.subr.mxu0 0.0
    %536 = vmatpush1.msra.mxu0 %v520
    %537 = vmatprep.subr.mxu0 0.0
    %538 = vmatpush1.msra.mxu0 %v521
    %539 = vmatprep.subr.mxu0 0.0
    %540 = vmatpush1.msra.mxu0 %v522
    %541 = vmatprep.subr.mxu0 0.0
    %542 = vmatpush1.msra.mxu0 %v523
    %543 = vmatprep.subr.mxu0 0.0
    %544 = vmatpush1.msra.mxu0 0.0
    %545 = vmatprep.subr.mxu0 0.0
    %546 = vmatpush1.msra.mxu0 0.0
    %547 = vmatprep.subr.mxu0 0.0
    %548 = vmatpush1.msra.mxu0 0.0
    %549 = vmatprep.subr.mxu0 0.0
    %550 = vmatpush1.msra.mxu0 0.0
    %551 = vmatprep.subr.mxu0 0.0
    %552 = vmatpush1.msra.mxu0 0.0
    %553 = vmatprep.subr.mxu0 0.0
    %554 = vmatpush1.msra.mxu0 0.0
    %555 = vmatprep.subr.mxu0 0.0
    %556 = vmatpush1.msra.mxu0 0.0
    %557 = vmatprep.subr.mxu0 0.0
    %558 = vmatpush1.msra.mxu0 0.0
    %559 = vmatprep.subr.mxu0 0.0
    %560 = vmatpush1.msra.mxu0 0.0
    %561 = vmatprep.subr.mxu0 0.0
    %562 = vmatpush1.msra.mxu0 0.0
    %563 = vmatprep.subr.mxu0 0.0
    %564 = vmatpush1.msra.mxu0 0.0
    %565 = vmatprep.subr.mxu0 0.0
    %566 = vmatpush1.msra.mxu0 0.0
    %567 = vmatprep.subr.mxu0 0.0
    %568 = vmatpush1.msra.mxu0 0.0
    %569 = vmatprep.subr.mxu0 0.0
    %570 = vmatpush1.msra.mxu0 0.0
    %571 = vmatprep.subr.mxu0 0.0
    %572 = vmatpush1.msra.mxu0 0.0
    %573 = vmatprep.subr.mxu0 0.0
    %574 = vmatpush1.msra.mxu0 0.0
    %575 = vmatprep.subr.mxu0 0.0
    %576 = vmatpush1.msra.mxu0 0.0
    %577 = vmatprep.subr.mxu0 0.0
    %578 = vmatpush1.msra.mxu0 0.0
    %579 = vmatprep.subr.mxu0 0.0
    %580 = vmatpush1.msra.mxu0 0.0
    %581 = vmatprep.subr.mxu0 0.0
    %582 = vmatpush1.msra.mxu0 0.0
    %583 = vmatprep.subr.mxu0 0.0
    %584 = vmatpush1.msra.mxu0 0.0
    %585 = vmatprep.subr.mxu0 0.0
    %586 = vmatpush1.msra.mxu0 0.0
    %587 = vmatprep.subr.mxu0 0.0
    %588 = vmatpush1.msra.mxu0 0.0
    %589 = vmatprep.subr.mxu0 0.0
    %590 = vmatpush1.msra.mxu0 0.0
    %591 = vmatprep.subr.mxu0 0.0
    %592 = vmatpush1.msra.mxu0 0.0
    %593 = vmatprep.subr.mxu0 0.0
    %594 = vmatpush1.msra.mxu0 0.0
    %595 = vmatprep.subr.mxu0 0.0
    %596 = vmatpush1.msra.mxu0 0.0
    %597 = vmatprep.subr.mxu0 0.0
    %598 = vmatpush1.msra.mxu0 0.0
    %599 = vmatprep.mubr.f32.mxu0 0.0
    %600 = vmatmul.mubr.f32.gmra.mrb[0].mxu0 %v530
    %v601 = vpop.f32.mrb[0].mxu0
    %v602 = vadd.f32 %v528, %v601
    %v603 = vpop.f32.mrb[0].mxu0
    %604 = vmatprep.mubr.f32.mxu0 0.0
    %605 = vmatmul.mubr.f32.gmra.mrb[0].mxu0 %v533
    %v606 = vpop.f32.mrb[0].mxu0
    %v607 = vadd.f32 %v528, %v606
    %v608 = vpop.f32.mrb[0].mxu0
    %609 = vdwg.mxu0
    %v610 = vadd.f32 %v15, %v602
    %v611 = vadd.f32 %v16, %v607
    %v612 = vld [vmem:[%s2 + $0x102] sm:$0x1]
    %v613 = vld [vmem:[%s2 + $0x103] sm:$0x1]
    %v614 = vsel %vm37, %v610, 0.0
    %615 = vadd.xlane.f32.xlu0 %v614
    %v616 = vpop.xlane.xlu0 %615
    %v617 = vsel %vm37, %v611, 0.0
    %618 = vadd.xlane.f32.xlu0 %v617
    %v619 = vpop.xlane.xlu0 %618
    %v620 = vrcp.pop 32.0
    %v621 = vmul.f32 %v616, %v620
    %v622 = vmul.f32 %v619, %v620
    %v623 = vsub.f32 %v610, %v621
    %v624 = vsub.f32 %v611, %v622
    %v625 = vmul.f32 %v623, %v623
    %v626 = vmul.f32 %v624, %v624
    %v627 = vsel %vm37, %v625, 0.0
    %628 = vadd.xlane.f32.xlu0 %v627
    %v629 = vpop.xlane.xlu0 %628
    %v630 = vsel %vm37, %v626, 0.0
    %631 = vadd.xlane.f32.xlu0 %v630
    %v632 = vpop.xlane.xlu0 %631
    %v633 = vmul.f32 %v629, %v620
    %v634 = vmul.f32 %v632, %v620
    %v635 = vadd.f32 %v633, 1e-05
    %v636 = vadd.f32 %v634, 1e-05
    %v637 = vrsqrt.pop %v635
    %v638 = vrsqrt.pop %v636
    %v639 = vmul.f32 %v623, %v637
    %v640 = vmul.f32 %v624, %v638
    %v641 = vlaneseq
    %v642 = vshrl.u32 %v641, 7
    %v643 = vsub.s32 0, %v642
    %v644 = vrot.slane %v612, %v643
    %v645 = vmul.f32 %v639, %v644
    %v646 = vmul.f32 %v640, %v644
    %v647 = vlaneseq
    %v648 = vshrl.u32 %v647, 7
    %v649 = vsub.s32 0, %v648
    %v650 = vrot.slane %v613, %v649
    %v651 = vadd.f32 %v645, %v650
    %v652 = vadd.f32 %v646, %v650
    %v653 = vld [vmem:[%s2 + $0xc0] sm:$0xff]
    %v654 = vld [vmem:[%s2 + $0xc8] sm:$0xff]
    %v655 = vld [vmem:[%s2 + $0xd0] sm:$0xff]
    %v656 = vld [vmem:[%s2 + $0xd8] sm:$0xff]
    %v657 = vld [vmem:[%s2 + $0x104] sm:$0x1]
    %v658 = vlaneseq
    %v659 = vshrl.u32 %v658, 7
    %v660 = vsub.s32 0, %v659
    %v661 = vrot.slane %v657, %v660
    %v663 = vsel %vm37, %v651, 0
    %v666 = vsel %vm37, %v652, 0
    %668 = vmatprep.subr.mxu0 0.0
    %669 = vmatpush1.msra.mxu0 %v653
    %670 = vmatprep.subr.mxu0 0.0
    %671 = vmatpush1.msra.mxu0 %v654
    %672 = vmatprep.subr.mxu0 0.0
    %673 = vmatpush1.msra.mxu0 %v655
    %674 = vmatprep.subr.mxu0 0.0
    %675 = vmatpush1.msra.mxu0 %v656
    %676 = vmatprep.subr.mxu0 0.0
    %677 = vmatpush1.msra.mxu0 0.0
    %678 = vmatprep.subr.mxu0 0.0
    %679 = vmatpush1.msra.mxu0 0.0
    %680 = vmatprep.subr.mxu0 0.0
    %681 = vmatpush1.msra.mxu0 0.0
    %682 = vmatprep.subr.mxu0 0.0
    %683 = vmatpush1.msra.mxu0 0.0
    %684 = vmatprep.subr.mxu0 0.0
    %685 = vmatpush1.msra.mxu0 0.0
    %686 = vmatprep.subr.mxu0 0.0
    %687 = vmatpush1.msra.mxu0 0.0
    %688 = vmatprep.subr.mxu0 0.0
    %689 = vmatpush1.msra.mxu0 0.0
    %690 = vmatprep.subr.mxu0 0.0
    %691 = vmatpush1.msra.mxu0 0.0
    %692 = vmatprep.subr.mxu0 0.0
    %693 = vmatpush1.msra.mxu0 0.0
    %694 = vmatprep.subr.mxu0 0.0
    %695 = vmatpush1.msra.mxu0 0.0
    %696 = vmatprep.subr.mxu0 0.0
    %697 = vmatpush1.msra.mxu0 0.0
    %698 = vmatprep.subr.mxu0 0.0
    %699 = vmatpush1.msra.mxu0 0.0
    %700 = vmatprep.subr.mxu0 0.0
    %701 = vmatpush1.msra.mxu0 0.0
    %702 = vmatprep.subr.mxu0 0.0
    %703 = vmatpush1.msra.mxu0 0.0
    %704 = vmatprep.subr.mxu0 0.0
    %705 = vmatpush1.msra.mxu0 0.0
    %706 = vmatprep.subr.mxu0 0.0
    %707 = vmatpush1.msra.mxu0 0.0
    %708 = vmatprep.subr.mxu0 0.0
    %709 = vmatpush1.msra.mxu0 0.0
    %710 = vmatprep.subr.mxu0 0.0
    %711 = vmatpush1.msra.mxu0 0.0
    %712 = vmatprep.subr.mxu0 0.0
    %713 = vmatpush1.msra.mxu0 0.0
    %714 = vmatprep.subr.mxu0 0.0
    %715 = vmatpush1.msra.mxu0 0.0
    %716 = vmatprep.subr.mxu0 0.0
    %717 = vmatpush1.msra.mxu0 0.0
    %718 = vmatprep.subr.mxu0 0.0
    %719 = vmatpush1.msra.mxu0 0.0
    %720 = vmatprep.subr.mxu0 0.0
    %721 = vmatpush1.msra.mxu0 0.0
    %722 = vmatprep.subr.mxu0 0.0
    %723 = vmatpush1.msra.mxu0 0.0
    %724 = vmatprep.subr.mxu0 0.0
    %725 = vmatpush1.msra.mxu0 0.0
    %726 = vmatprep.subr.mxu0 0.0
    %727 = vmatpush1.msra.mxu0 0.0
    %728 = vmatprep.subr.mxu0 0.0
    %729 = vmatpush1.msra.mxu0 0.0
    %730 = vmatprep.subr.mxu0 0.0
    %731 = vmatpush1.msra.mxu0 0.0
    %732 = vmatprep.mubr.f32.mxu0 0.0
    %733 = vmatmul.mubr.f32.gmra.mrb[0].mxu0 %v663
    %v734 = vpop.f32.mrb[0].mxu0
    %v735 = vadd.f32 %v661, %v734
    %v736 = vpop.f32.mrb[0].mxu0
    %737 = vmatprep.mubr.f32.mxu0 0.0
    %738 = vmatmul.mubr.f32.gmra.mrb[0].mxu0 %v666
    %v739 = vpop.f32.mrb[0].mxu0
    %v740 = vadd.f32 %v661, %v739
    %v741 = vpop.f32.mrb[0].mxu0
    %742 = vdwg.mxu0
    %v743 = vld [vmem:[%s2 + $0x20] sm:$0xff]
    %v744 = vld [vmem:[%s2 + $0x28] sm:$0xff]
    %v745 = vld [vmem:[%s2 + $0x30] sm:$0xff]
    %v746 = vld [vmem:[%s2 + $0x38] sm:$0xff]
    %v747 = vld [vmem:[%s2 + $0x105] sm:$0x1]
    %v748 = vlaneseq
    %v749 = vshrl.u32 %v748, 7
    %v750 = vsub.s32 0, %v749
    %v751 = vrot.slane %v747, %v750
    %v753 = vsel %vm37, %v17, 0
    %v756 = vsel %vm37, %v18, 0
    %v759 = vsel %vm37, %v19, 0
    %761 = vmatprep.subr.mxu0 0.0
    %762 = vmatpush1.msra.mxu0 %v743
    %763 = vmatprep.subr.mxu0 0.0
    %764 = vmatpush1.msra.mxu0 %v744
    %765 = vmatprep.subr.mxu0 0.0
    %766 = vmatpush1.msra.mxu0 %v745
    %767 = vmatprep.subr.mxu0 0.0
    %768 = vmatpush1.msra.mxu0 %v746
    %769 = vmatprep.subr.mxu0 0.0
    %770 = vmatpush1.msra.mxu0 0.0
    %771 = vmatprep.subr.mxu0 0.0
    %772 = vmatpush1.msra.mxu0 0.0
    %773 = vmatprep.subr.mxu0 0.0
    %774 = vmatpush1.msra.mxu0 0.0
    %775 = vmatprep.subr.mxu0 0.0
    %776 = vmatpush1.msra.mxu0 0.0
    %777 = vmatprep.subr.mxu0 0.0
    %778 = vmatpush1.msra.mxu0 0.0
    %779 = vmatprep.subr.mxu0 0.0
    %780 = vmatpush1.msra.mxu0 0.0
    %781 = vmatprep.subr.mxu0 0.0
    %782 = vmatpush1.msra.mxu0 0.0
    %783 = vmatprep.subr.mxu0 0.0
    %784 = vmatpush1.msra.mxu0 0.0
    %785 = vmatprep.subr.mxu0 0.0
    %786 = vmatpush1.msra.mxu0 0.0
    %787 = vmatprep.subr.mxu0 0.0
    %788 = vmatpush1.msra.mxu0 0.0
    %789 = vmatprep.subr.mxu0 0.0
    %790 = vmatpush1.msra.mxu0 0.0
    %791 = vmatprep.subr.mxu0 0.0
    %792 = vmatpush1.msra.mxu0 0.0
    %793 = vmatprep.subr.mxu0 0.0
    %794 = vmatpush1.msra.mxu0 0.0
    %795 = vmatprep.subr.mxu0 0.0
    %796 = vmatpush1.msra.mxu0 0.0
    %797 = vmatprep.subr.mxu0 0.0
    %798 = vmatpush1.msra.mxu0 0.0
    %799 = vmatprep.subr.mxu0 0.0
    %800 = vmatpush1.msra.mxu0 0.0
    %801 = vmatprep.subr.mxu0 0.0
    %802 = vmatpush1.msra.mxu0 0.0
    %803 = vmatprep.subr.mxu0 0.0
    %804 = vmatpush1.msra.mxu0 0.0
    %805 = vmatprep.subr.mxu0 0.0
    %806 = vmatpush1.msra.mxu0 0.0
    %807 = vmatprep.subr.mxu0 0.0
    %808 = vmatpush1.msra.mxu0 0.0
    %809 = vmatprep.subr.mxu0 0.0
    %810 = vmatpush1.msra.mxu0 0.0
    %811 = vmatprep.subr.mxu0 0.0
    %812 = vmatpush1.msra.mxu0 0.0
    %813 = vmatprep.subr.mxu0 0.0
    %814 = vmatpush1.msra.mxu0 0.0
    %815 = vmatprep.subr.mxu0 0.0
    %816 = vmatpush1.msra.mxu0 0.0
    %817 = vmatprep.subr.mxu0 0.0
    %818 = vmatpush1.msra.mxu0 0.0
    %819 = vmatprep.subr.mxu0 0.0
    %820 = vmatpush1.msra.mxu0 0.0
    %821 = vmatprep.subr.mxu0 0.0
    %822 = vmatpush1.msra.mxu0 0.0
    %823 = vmatprep.subr.mxu0 0.0
    %824 = vmatpush1.msra.mxu0 0.0
    %825 = vmatprep.mubr.f32.mxu0 0.0
    %826 = vmatmul.mubr.f32.gmra.mrb[0].mxu0 %v753
    %v827 = vpop.f32.mrb[0].mxu0
    %v828 = vadd.f32 %v751, %v827
    %v829 = vpop.f32.mrb[0].mxu0
    %830 = vmatprep.mubr.f32.mxu0 0.0
    %831 = vmatmul.mubr.f32.gmra.mrb[0].mxu0 %v756
    %v832 = vpop.f32.mrb[0].mxu0
    %v833 = vadd.f32 %v751, %v832
    %v834 = vpop.f32.mrb[0].mxu0
    %835 = vmatprep.mubr.f32.mxu0 0.0
    %836 = vmatmul.mubr.f32.gmra.mrb[0].mxu0 %v759
    %v837 = vpop.f32.mrb[0].mxu0
    %v838 = vadd.f32 %v751, %v837
    %v839 = vpop.f32.mrb[0].mxu0
    %840 = vdwg.mxu0
    %v841 = vld [vmem:[%s2 + $0x190] sm:$0xff]
    %v842 = vld [vmem:[%s2 + $0x198] sm:$0xff]
    %v843 = vld [vmem:[%s2 + $0x1a0] sm:$0xff]
    %v844 = vld [vmem:[%s2 + $0x1a8] sm:$0xff]
    %v845 = vld [vmem:[%s2 + $0x1b0] sm:$0xff]
    %v846 = vld [vmem:[%s2 + $0x1b8] sm:$0xff]
    %v847 = vld [vmem:[%s2 + $0x1c0] sm:$0xff]
    %v848 = vld [vmem:[%s2 + $0x1c8] sm:$0xff]
    %v849 = vmul.f32 %v735, %v20
    %v850 = vmul.f32 %v740, %v21
    %v851 = vmul.f32 %v735, %v22
    %v852 = vmul.f32 %v740, %v23
    %v853 = vmul.f32 %v735, %v24
    %v854 = vmul.f32 %v740, %v25
    %v855 = vmul.f32 %v735, %v26
    %v856 = vmul.f32 %v740, %v27
    %v858 = vsel %vm37, %v849, 0
    %v861 = vsel %vm37, %v850, 0
    %v864 = vsel %vm37, %v851, 0
    %v867 = vsel %vm37, %v852, 0
    %v870 = vsel %vm37, %v853, 0
    %v873 = vsel %vm37, %v854, 0
    %v876 = vsel %vm37, %v855, 0
    %v879 = vsel %vm37, %v856, 0
    %v882 = vsel %vm37, %v828, 0
    %v885 = vsel %vm37, %v833, 0
    %v888 = vsel %vm37, %v838, 0
    %890 = vmatprep.subr.mxu0 0.0
    %891 = vmatpush1.xpose.msra.mxu0 %v882
    %892 = vmatprep.subr.mxu0 0.0
    %893 = vmatpush1.xpose.msra.mxu0 %v885
    %894 = vmatprep.subr.mxu0 0.0
    %895 = vmatpush1.xpose.msra.mxu0 %v888
    %896 = vmatprep.subr.mxu0 0.0
    %897 = vmatpush1.xpose.msra.mxu0 0.0
    %898 = vmatprep.subr.mxu0 0.0
    %899 = vmatpush1.xpose.msra.mxu0 0.0
    %900 = vmatprep.subr.mxu0 0.0
    %901 = vmatpush1.xpose.msra.mxu0 0.0
    %902 = vmatprep.subr.mxu0 0.0
    %903 = vmatpush1.xpose.msra.mxu0 0.0
    %904 = vmatprep.subr.mxu0 0.0
    %905 = vmatpush1.xpose.msra.mxu0 0.0
    %906 = vmatprep.subr.mxu0 0.0
    %907 = vmatpush1.xpose.msra.mxu0 0.0
    %908 = vmatprep.subr.mxu0 0.0
    %909 = vmatpush1.xpose.msra.mxu0 0.0
    %910 = vmatprep.subr.mxu0 0.0
    %911 = vmatpush1.xpose.msra.mxu0 0.0
    %912 = vmatprep.subr.mxu0 0.0
    %913 = vmatpush1.xpose.msra.mxu0 0.0
    %914 = vmatprep.subr.mxu0 0.0
    %915 = vmatpush1.xpose.msra.mxu0 0.0
    %916 = vmatprep.subr.mxu0 0.0
    %917 = vmatpush1.xpose.msra.mxu0 0.0
    %918 = vmatprep.subr.mxu0 0.0
    %919 = vmatpush1.xpose.msra.mxu0 0.0
    %920 = vmatprep.subr.mxu0 0.0
    %921 = vmatpush1.xpose.msra.mxu0 0.0
    %922 = vmatprep.subr.mxu0 0.0
    %923 = vmatpush1.xpose.msra.mxu0 0.0
    %924 = vmatprep.subr.mxu0 0.0
    %925 = vmatpush1.xpose.msra.mxu0 0.0
    %926 = vmatprep.subr.mxu0 0.0
    %927 = vmatpush1.xpose.msra.mxu0 0.0
    %928 = vmatprep.subr.mxu0 0.0
    %929 = vmatpush1.xpose.msra.mxu0 0.0
    %930 = vmatprep.subr.mxu0 0.0
    %931 = vmatpush1.xpose.msra.mxu0 0.0
    %932 = vmatprep.subr.mxu0 0.0
    %933 = vmatpush1.xpose.msra.mxu0 0.0
    %934 = vmatprep.subr.mxu0 0.0
    %935 = vmatpush1.xpose.msra.mxu0 0.0
    %936 = vmatprep.subr.mxu0 0.0
    %937 = vmatpush1.xpose.msra.mxu0 0.0
    %938 = vmatprep.subr.mxu0 0.0
    %939 = vmatpush1.xpose.msra.mxu0 0.0
    %940 = vmatprep.subr.mxu0 0.0
    %941 = vmatpush1.xpose.msra.mxu0 0.0
    %942 = vmatprep.subr.mxu0 0.0
    %943 = vmatpush1.xpose.msra.mxu0 0.0
    %944 = vmatprep.subr.mxu0 0.0
    %945 = vmatpush1.xpose.msra.mxu0 0.0
    %946 = vmatprep.subr.mxu0 0.0
    %947 = vmatpush1.xpose.msra.mxu0 0.0
    %948 = vmatprep.subr.mxu0 0.0
    %949 = vmatpush1.xpose.msra.mxu0 0.0
    %950 = vmatprep.subr.mxu0 0.0
    %951 = vmatpush1.xpose.msra.mxu0 0.0
    %952 = vmatprep.subr.mxu0 0.0
    %953 = vmatpush1.xpose.msra.mxu0 0.0
    %954 = vmatprep.mubr.f32.mxu0 0.0
    %955 = vmatmul.mubr.f32.gmra.mrb[0].mxu0 %v858
    %v956 = vpop.f32.mrb[0].mxu0
    %v957 = vadd.f32 %v841, %v956
    %v958 = vpop.f32.mrb[0].mxu0
    %959 = vmatprep.mubr.f32.mxu0 0.0
    %960 = vmatmul.mubr.f32.gmra.mrb[0].mxu0 %v861
    %v961 = vpop.f32.mrb[0].mxu0
    %v962 = vadd.f32 %v842, %v961
    %v963 = vpop.f32.mrb[0].mxu0
    %964 = vmatprep.mubr.f32.mxu0 0.0
    %965 = vmatmul.mubr.f32.gmra.mrb[0].mxu0 %v864
    %v966 = vpop.f32.mrb[0].mxu0
    %v967 = vadd.f32 %v843, %v966
    %v968 = vpop.f32.mrb[0].mxu0
    %969 = vmatprep.mubr.f32.mxu0 0.0
    %970 = vmatmul.mubr.f32.gmra.mrb[0].mxu0 %v867
    %v971 = vpop.f32.mrb[0].mxu0
    %v972 = vadd.f32 %v844, %v971
    %v973 = vpop.f32.mrb[0].mxu0
    %974 = vmatprep.mubr.f32.mxu0 0.0
    %975 = vmatmul.mubr.f32.gmra.mrb[0].mxu0 %v870
    %v976 = vpop.f32.mrb[0].mxu0
    %v977 = vadd.f32 %v845, %v976
    %v978 = vpop.f32.mrb[0].mxu0
    %979 = vmatprep.mubr.f32.mxu0 0.0
    %980 = vmatmul.mubr.f32.gmra.mrb[0].mxu0 %v873
    %v981 = vpop.f32.mrb[0].mxu0
    %v982 = vadd.f32 %v846, %v981
    %v983 = vpop.f32.mrb[0].mxu0
    %984 = vmatprep.mubr.f32.mxu0 0.0
    %985 = vmatmul.mubr.f32.gmra.mrb[0].mxu0 %v876
    %v986 = vpop.f32.mrb[0].mxu0
    %v987 = vadd.f32 %v847, %v986
    %v988 = vpop.f32.mrb[0].mxu0
    %989 = vmatprep.mubr.f32.mxu0 0.0
    %990 = vmatmul.mubr.f32.gmra.mrb[0].mxu0 %v879
    %v991 = vpop.f32.mrb[0].mxu0
    %v992 = vadd.f32 %v848, %v991
    %v993 = vpop.f32.mrb[0].mxu0
    %994 = vdwg.mxu0
    %vm995 = vcmask 195584
    %v996 = vsel %vm995, %v957, -inf
    %997 = vmax.xlane.f32.xlu0 %v996
    %v998 = vpop.xlane.xlu0 %997
    %v999 = vsel %vm995, %v962, -inf
    %1000 = vmax.xlane.f32.xlu0 %v999
    %v1001 = vpop.xlane.xlu0 %1000
    %v1002 = vsel %vm995, %v967, -inf
    %1003 = vmax.xlane.f32.xlu0 %v1002
    %v1004 = vpop.xlane.xlu0 %1003
    %v1005 = vsel %vm995, %v972, -inf
    %1006 = vmax.xlane.f32.xlu0 %v1005
    %v1007 = vpop.xlane.xlu0 %1006
    %v1008 = vsel %vm995, %v977, -inf
    %1009 = vmax.xlane.f32.xlu0 %v1008
    %v1010 = vpop.xlane.xlu0 %1009
    %v1011 = vsel %vm995, %v982, -inf
    %1012 = vmax.xlane.f32.xlu0 %v1011
    %v1013 = vpop.xlane.xlu0 %1012
    %v1014 = vsel %vm995, %v987, -inf
    %1015 = vmax.xlane.f32.xlu0 %v1014
    %v1016 = vpop.xlane.xlu0 %1015
    %v1017 = vsel %vm995, %v992, -inf
    %1018 = vmax.xlane.f32.xlu0 %v1017
    %v1019 = vpop.xlane.xlu0 %1018
    %v1020 = vsub.f32 %v957, %v998
    %v1021 = vsub.f32 %v962, %v1001
    %v1022 = vsub.f32 %v967, %v1004
    %v1023 = vsub.f32 %v972, %v1007
    %v1024 = vsub.f32 %v977, %v1010
    %v1025 = vsub.f32 %v982, %v1013
    %v1026 = vsub.f32 %v987, %v1016
    %v1027 = vsub.f32 %v992, %v1019
    %v1028 = vmul.f32 %v1020, 1.442695
    %v1029 = vpow.pop %v1028
    %v1030 = vmul.f32 %v1021, 1.442695
    %v1031 = vpow.pop %v1030
    %v1032 = vmul.f32 %v1022, 1.442695
    %v1033 = vpow.pop %v1032
    %v1034 = vmul.f32 %v1023, 1.442695
    %v1035 = vpow.pop %v1034
    %v1036 = vmul.f32 %v1024, 1.442695
    %v1037 = vpow.pop %v1036
    %v1038 = vmul.f32 %v1025, 1.442695
    %v1039 = vpow.pop %v1038
    %v1040 = vmul.f32 %v1026, 1.442695
    %v1041 = vpow.pop %v1040
    %v1042 = vmul.f32 %v1027, 1.442695
    %v1043 = vpow.pop %v1042
    %v1044 = vsel %vm995, %v1029, 0.0
    %1045 = vadd.xlane.f32.xlu0 %v1044
    %v1046 = vpop.xlane.xlu0 %1045
    %v1047 = vsel %vm995, %v1031, 0.0
    %1048 = vadd.xlane.f32.xlu0 %v1047
    %v1049 = vpop.xlane.xlu0 %1048
    %v1050 = vsel %vm995, %v1033, 0.0
    %1051 = vadd.xlane.f32.xlu0 %v1050
    %v1052 = vpop.xlane.xlu0 %1051
    %v1053 = vsel %vm995, %v1035, 0.0
    %1054 = vadd.xlane.f32.xlu0 %v1053
    %v1055 = vpop.xlane.xlu0 %1054
    %v1056 = vsel %vm995, %v1037, 0.0
    %1057 = vadd.xlane.f32.xlu0 %v1056
    %v1058 = vpop.xlane.xlu0 %1057
    %v1059 = vsel %vm995, %v1039, 0.0
    %1060 = vadd.xlane.f32.xlu0 %v1059
    %v1061 = vpop.xlane.xlu0 %1060
    %v1062 = vsel %vm995, %v1041, 0.0
    %1063 = vadd.xlane.f32.xlu0 %v1062
    %v1064 = vpop.xlane.xlu0 %1063
    %v1065 = vsel %vm995, %v1043, 0.0
    %1066 = vadd.xlane.f32.xlu0 %v1065
    %v1067 = vpop.xlane.xlu0 %1066
    %v1068 = vrcp.pop %v1046
    %v1069 = vmul.f32 1.0, %v1068
    %v1070 = vrcp.pop %v1049
    %v1071 = vmul.f32 1.0, %v1070
    %v1072 = vrcp.pop %v1052
    %v1073 = vmul.f32 1.0, %v1072
    %v1074 = vrcp.pop %v1055
    %v1075 = vmul.f32 1.0, %v1074
    %v1076 = vrcp.pop %v1058
    %v1077 = vmul.f32 1.0, %v1076
    %v1078 = vrcp.pop %v1061
    %v1079 = vmul.f32 1.0, %v1078
    %v1080 = vrcp.pop %v1064
    %v1081 = vmul.f32 1.0, %v1080
    %v1082 = vrcp.pop %v1067
    %v1083 = vmul.f32 1.0, %v1082
    %v1084 = vmul.f32 %v1029, %v1069
    %v1085 = vmul.f32 %v1031, %v1071
    %v1086 = vmul.f32 %v1033, %v1073
    %v1087 = vmul.f32 %v1035, %v1075
    %v1088 = vmul.f32 %v1037, %v1077
    %v1089 = vmul.f32 %v1039, %v1079
    %v1090 = vmul.f32 %v1041, %v1081
    %v1091 = vmul.f32 %v1043, %v1083
    %1092 = vrot.lane.b32.xlu0 %v828, 96
    %v1093 = vpop.permute.xlu0 %1092
    %1094 = vrot.lane.b32.xlu0 %v833, 96
    %v1095 = vpop.permute.xlu0 %1094
    %1096 = vrot.lane.b32.xlu0 %v838, 96
    %v1097 = vpop.permute.xlu0 %1096
    %v1102 = vsel %vm995, %v1084, 0
    %v1105 = vsel %vm995, %v1085, 0
    %v1108 = vsel %vm995, %v1086, 0
    %v1111 = vsel %vm995, %v1087, 0
    %v1114 = vsel %vm995, %v1088, 0
    %v1117 = vsel %vm995, %v1089, 0
    %v1120 = vsel %vm995, %v1090, 0
    %v1123 = vsel %vm995, %v1091, 0
    %1125 = vmatprep.subr.mxu0 0.0
    %1126 = vmatpush1.msra.mxu0 %v1093
    %1127 = vmatprep.subr.mxu0 0.0
    %1128 = vmatpush1.msra.mxu0 %v1095
    %1129 = vmatprep.subr.mxu0 0.0
    %1130 = vmatpush1.msra.mxu0 %v1097
    %1131 = vmatprep.subr.mxu0 0.0
    %1132 = vmatpush1.msra.mxu0 0.0
    %1133 = vmatprep.subr.mxu0 0.0
    %1134 = vmatpush1.msra.mxu0 0.0
    %1135 = vmatprep.subr.mxu0 0.0
    %1136 = vmatpush1.msra.mxu0 0.0
    %1137 = vmatprep.subr.mxu0 0.0
    %1138 = vmatpush1.msra.mxu0 0.0
    %1139 = vmatprep.subr.mxu0 0.0
    %1140 = vmatpush1.msra.mxu0 0.0
    %1141 = vmatprep.subr.mxu0 0.0
    %1142 = vmatpush1.msra.mxu0 0.0
    %1143 = vmatprep.subr.mxu0 0.0
    %1144 = vmatpush1.msra.mxu0 0.0
    %1145 = vmatprep.subr.mxu0 0.0
    %1146 = vmatpush1.msra.mxu0 0.0
    %1147 = vmatprep.subr.mxu0 0.0
    %1148 = vmatpush1.msra.mxu0 0.0
    %1149 = vmatprep.subr.mxu0 0.0
    %1150 = vmatpush1.msra.mxu0 0.0
    %1151 = vmatprep.subr.mxu0 0.0
    %1152 = vmatpush1.msra.mxu0 0.0
    %1153 = vmatprep.subr.mxu0 0.0
    %1154 = vmatpush1.msra.mxu0 0.0
    %1155 = vmatprep.subr.mxu0 0.0
    %1156 = vmatpush1.msra.mxu0 0.0
    %1157 = vmatprep.subr.mxu0 0.0
    %1158 = vmatpush1.msra.mxu0 0.0
    %1159 = vmatprep.subr.mxu0 0.0
    %1160 = vmatpush1.msra.mxu0 0.0
    %1161 = vmatprep.subr.mxu0 0.0
    %1162 = vmatpush1.msra.mxu0 0.0
    %1163 = vmatprep.subr.mxu0 0.0
    %1164 = vmatpush1.msra.mxu0 0.0
    %1165 = vmatprep.subr.mxu0 0.0
    %1166 = vmatpush1.msra.mxu0 0.0
    %1167 = vmatprep.subr.mxu0 0.0
    %1168 = vmatpush1.msra.mxu0 0.0
    %1169 = vmatprep.subr.mxu0 0.0
    %1170 = vmatpush1.msra.mxu0 0.0
    %1171 = vmatprep.subr.mxu0 0.0
    %1172 = vmatpush1.msra.mxu0 0.0
    %1173 = vmatprep.subr.mxu0 0.0
    %1174 = vmatpush1.msra.mxu0 0.0
    %1175 = vmatprep.subr.mxu0 0.0
    %1176 = vmatpush1.msra.mxu0 0.0
    %1177 = vmatprep.subr.mxu0 0.0
    %1178 = vmatpush1.msra.mxu0 0.0
    %1179 = vmatprep.subr.mxu0 0.0
    %1180 = vmatpush1.msra.mxu0 0.0
    %1181 = vmatprep.subr.mxu0 0.0
    %1182 = vmatpush1.msra.mxu0 0.0
    %1183 = vmatprep.subr.mxu0 0.0
    %1184 = vmatpush1.msra.mxu0 0.0
    %1185 = vmatprep.subr.mxu0 0.0
    %1186 = vmatpush1.msra.mxu0 0.0
    %1187 = vmatprep.subr.mxu0 0.0
    %1188 = vmatpush1.msra.mxu0 0.0
    %1189 = vmatprep.mubr.f32.mxu0 0.0
    %1190 = vmatmul.mubr.f32.gmra.mrb[0].mxu0 %v1102
    %v1191 = vpop.f32.mrb[0].mxu0
    %v1192 = vadd.f32 0.0, %v1191
    %v1193 = vpop.f32.mrb[0].mxu0
    %1194 = vmatprep.mubr.f32.mxu0 0.0
    %1195 = vmatmul.mubr.f32.gmra.mrb[0].mxu0 %v1105
    %v1196 = vpop.f32.mrb[0].mxu0
    %v1197 = vadd.f32 0.0, %v1196
    %v1198 = vpop.f32.mrb[0].mxu0
    %1199 = vmatprep.mubr.f32.mxu0 0.0
    %1200 = vmatmul.mubr.f32.gmra.mrb[0].mxu0 %v1108
    %v1201 = vpop.f32.mrb[0].mxu0
    %v1202 = vadd.f32 0.0, %v1201
    %v1203 = vpop.f32.mrb[0].mxu0
    %1204 = vmatprep.mubr.f32.mxu0 0.0
    %1205 = vmatmul.mubr.f32.gmra.mrb[0].mxu0 %v1111
    %v1206 = vpop.f32.mrb[0].mxu0
    %v1207 = vadd.f32 0.0, %v1206
    %v1208 = vpop.f32.mrb[0].mxu0
    %1209 = vmatprep.mubr.f32.mxu0 0.0
    %1210 = vmatmul.mubr.f32.gmra.mrb[0].mxu0 %v1114
    %v1211 = vpop.f32.mrb[0].mxu0
    %v1212 = vadd.f32 0.0, %v1211
    %v1213 = vpop.f32.mrb[0].mxu0
    %1214 = vmatprep.mubr.f32.mxu0 0.0
    %1215 = vmatmul.mubr.f32.gmra.mrb[0].mxu0 %v1117
    %v1216 = vpop.f32.mrb[0].mxu0
    %v1217 = vadd.f32 0.0, %v1216
    %v1218 = vpop.f32.mrb[0].mxu0
    %1219 = vmatprep.mubr.f32.mxu0 0.0
    %1220 = vmatmul.mubr.f32.gmra.mrb[0].mxu0 %v1120
    %v1221 = vpop.f32.mrb[0].mxu0
    %v1222 = vadd.f32 0.0, %v1221
    %v1223 = vpop.f32.mrb[0].mxu0
    %1224 = vmatprep.mubr.f32.mxu0 0.0
    %1225 = vmatmul.mubr.f32.gmra.mrb[0].mxu0 %v1123
    %v1226 = vpop.f32.mrb[0].mxu0
    %v1227 = vadd.f32 0.0, %v1226
    %v1228 = vpop.f32.mrb[0].mxu0
    %1229 = vdwg.mxu0
    %v1230 = vmul.f32 %v1192, %v20
    %v1231 = vmul.f32 %v1197, %v21
    %v1232 = vmul.f32 %v1202, %v22
    %v1233 = vmul.f32 %v1207, %v23
    %v1234 = vmul.f32 %v1212, %v24
    %v1235 = vmul.f32 %v1217, %v25
    %v1236 = vmul.f32 %v1222, %v26
    %v1237 = vmul.f32 %v1227, %v27
    %v1238 = vadd.f32 %v1230, %v1232
    %v1239 = vadd.f32 %v1231, %v1233
    %v1240 = vadd.f32 %v1238, %v1234
    %v1241 = vadd.f32 %v1239, %v1235
    %v1242 = vadd.f32 %v1240, %v1236
    %v1243 = vadd.f32 %v1241, %v1237
    %v1244 = vld [vmem:[%s2 + $0xe0] sm:$0xff]
    %v1245 = vld [vmem:[%s2 + $0xe8] sm:$0xff]
    %v1246 = vld [vmem:[%s2 + $0xf0] sm:$0xff]
    %v1247 = vld [vmem:[%s2 + $0xf8] sm:$0xff]
    %v1248 = vld [vmem:[%s2 + $0x106] sm:$0x1]
    %v1249 = vlaneseq
    %v1250 = vshrl.u32 %v1249, 7
    %v1251 = vsub.s32 0, %v1250
    %v1252 = vrot.slane %v1248, %v1251
    %v1254 = vsel %vm37, %v1242, 0
    %v1257 = vsel %vm37, %v1243, 0
    %1259 = vmatprep.subr.mxu0 0.0
    %1260 = vmatpush1.msra.mxu0 %v1244
    %1261 = vmatprep.subr.mxu0 0.0
    %1262 = vmatpush1.msra.mxu0 %v1245
    %1263 = vmatprep.subr.mxu0 0.0
    %1264 = vmatpush1.msra.mxu0 %v1246
    %1265 = vmatprep.subr.mxu0 0.0
    %1266 = vmatpush1.msra.mxu0 %v1247
    %1267 = vmatprep.subr.mxu0 0.0
    %1268 = vmatpush1.msra.mxu0 0.0
    %1269 = vmatprep.subr.mxu0 0.0
    %1270 = vmatpush1.msra.mxu0 0.0
    %1271 = vmatprep.subr.mxu0 0.0
    %1272 = vmatpush1.msra.mxu0 0.0
    %1273 = vmatprep.subr.mxu0 0.0
    %1274 = vmatpush1.msra.mxu0 0.0
    %1275 = vmatprep.subr.mxu0 0.0
    %1276 = vmatpush1.msra.mxu0 0.0
    %1277 = vmatprep.subr.mxu0 0.0
    %1278 = vmatpush1.msra.mxu0 0.0
    %1279 = vmatprep.subr.mxu0 0.0
    %1280 = vmatpush1.msra.mxu0 0.0
    %1281 = vmatprep.subr.mxu0 0.0
    %1282 = vmatpush1.msra.mxu0 0.0
    %1283 = vmatprep.subr.mxu0 0.0
    %1284 = vmatpush1.msra.mxu0 0.0
    %1285 = vmatprep.subr.mxu0 0.0
    %1286 = vmatpush1.msra.mxu0 0.0
    %1287 = vmatprep.subr.mxu0 0.0
    %1288 = vmatpush1.msra.mxu0 0.0
    %1289 = vmatprep.subr.mxu0 0.0
    %1290 = vmatpush1.msra.mxu0 0.0
    %1291 = vmatprep.subr.mxu0 0.0
    %1292 = vmatpush1.msra.mxu0 0.0
    %1293 = vmatprep.subr.mxu0 0.0
    %1294 = vmatpush1.msra.mxu0 0.0
    %1295 = vmatprep.subr.mxu0 0.0
    %1296 = vmatpush1.msra.mxu0 0.0
    %1297 = vmatprep.subr.mxu0 0.0
    %1298 = vmatpush1.msra.mxu0 0.0
    %1299 = vmatprep.subr.mxu0 0.0
    %1300 = vmatpush1.msra.mxu0 0.0
    %1301 = vmatprep.subr.mxu0 0.0
    %1302 = vmatpush1.msra.mxu0 0.0
    %1303 = vmatprep.subr.mxu0 0.0
    %1304 = vmatpush1.msra.mxu0 0.0
    %1305 = vmatprep.subr.mxu0 0.0
    %1306 = vmatpush1.msra.mxu0 0.0
    %1307 = vmatprep.subr.mxu0 0.0
    %1308 = vmatpush1.msra.mxu0 0.0
    %1309 = vmatprep.subr.mxu0 0.0
    %1310 = vmatpush1.msra.mxu0 0.0
    %1311 = vmatprep.subr.mxu0 0.0
    %1312 = vmatpush1.msra.mxu0 0.0
    %1313 = vmatprep.subr.mxu0 0.0
    %1314 = vmatpush1.msra.mxu0 0.0
    %1315 = vmatprep.subr.mxu0 0.0
    %1316 = vmatpush1.msra.mxu0 0.0
    %1317 = vmatprep.subr.mxu0 0.0
    %1318 = vmatpush1.msra.mxu0 0.0
    %1319 = vmatprep.subr.mxu0 0.0
    %1320 = vmatpush1.msra.mxu0 0.0
    %1321 = vmatprep.subr.mxu0 0.0
    %1322 = vmatpush1.msra.mxu0 0.0
    %1323 = vmatprep.mubr.f32.mxu0 0.0
    %1324 = vmatmul.mubr.f32.gmra.mrb[0].mxu0 %v1254
    %v1325 = vpop.f32.mrb[0].mxu0
    %v1326 = vadd.f32 %v1252, %v1325
    %v1327 = vpop.f32.mrb[0].mxu0
    %1328 = vmatprep.mubr.f32.mxu0 0.0
    %1329 = vmatmul.mubr.f32.gmra.mrb[0].mxu0 %v1257
    %v1330 = vpop.f32.mrb[0].mxu0
    %v1331 = vadd.f32 %v1252, %v1330
    %v1332 = vpop.f32.mrb[0].mxu0
    %1333 = vdwg.mxu0
    %v1334 = vadd.f32 %v651, %v1326
    %v1335 = vadd.f32 %v652, %v1331
    %v1336 = vld [vmem:[%s2 + $0x107] sm:$0x1]
    %v1337 = vld [vmem:[%s2 + $0x108] sm:$0x1]
    %v1338 = vsel %vm37, %v1334, 0.0
    %1339 = vadd.xlane.f32.xlu0 %v1338
    %v1340 = vpop.xlane.xlu0 %1339
    %v1341 = vsel %vm37, %v1335, 0.0
    %1342 = vadd.xlane.f32.xlu0 %v1341
    %v1343 = vpop.xlane.xlu0 %1342
    %v1344 = vmul.f32 %v1340, %v620
    %v1345 = vmul.f32 %v1343, %v620
    %v1346 = vsub.f32 %v1334, %v1344
    %v1347 = vsub.f32 %v1335, %v1345
    %v1348 = vmul.f32 %v1346, %v1346
    %v1349 = vmul.f32 %v1347, %v1347
    %v1350 = vsel %vm37, %v1348, 0.0
    %1351 = vadd.xlane.f32.xlu0 %v1350
    %v1352 = vpop.xlane.xlu0 %1351
    %v1353 = vsel %vm37, %v1349, 0.0
    %1354 = vadd.xlane.f32.xlu0 %v1353
    %v1355 = vpop.xlane.xlu0 %1354
    %v1356 = vmul.f32 %v1352, %v620
    %v1357 = vmul.f32 %v1355, %v620
    %v1358 = vadd.f32 %v1356, 1e-05
    %v1359 = vadd.f32 %v1357, 1e-05
    %v1360 = vrsqrt.pop %v1358
    %v1361 = vrsqrt.pop %v1359
    %v1362 = vmul.f32 %v1346, %v1360
    %v1363 = vmul.f32 %v1347, %v1361
    %v1364 = vlaneseq
    %v1365 = vshrl.u32 %v1364, 7
    %v1366 = vsub.s32 0, %v1365
    %v1367 = vrot.slane %v1336, %v1366
    %v1368 = vmul.f32 %v1362, %v1367
    %v1369 = vmul.f32 %v1363, %v1367
    %v1370 = vlaneseq
    %v1371 = vshrl.u32 %v1370, 7
    %v1372 = vsub.s32 0, %v1371
    %v1373 = vrot.slane %v1337, %v1372
    %v1374 = vadd.f32 %v1368, %v1373
    %v1375 = vadd.f32 %v1369, %v1373
    %v1376 = vld [vmem:[%s2 + $0x40] sm:$0xff]
    %v1377 = vld [vmem:[%s2 + $0x48] sm:$0xff]
    %v1378 = vld [vmem:[%s2 + $0x50] sm:$0xff]
    %v1379 = vld [vmem:[%s2 + $0x58] sm:$0xff]
    %v1380 = vld [vmem:[%s2 + $0x109] sm:$0x1]
    %v1381 = vlaneseq
    %v1382 = vshrl.u32 %v1381, 7
    %v1383 = vsub.s32 0, %v1382
    %v1384 = vrot.slane %v1380, %v1383
    %v1386 = vsel %vm37, %v1374, 0
    %v1389 = vsel %vm37, %v1375, 0
    %1391 = vmatprep.subr.mxu0 0.0
    %1392 = vmatpush1.msra.mxu0 %v1376
    %1393 = vmatprep.subr.mxu0 0.0
    %1394 = vmatpush1.msra.mxu0 %v1377
    %1395 = vmatprep.subr.mxu0 0.0
    %1396 = vmatpush1.msra.mxu0 %v1378
    %1397 = vmatprep.subr.mxu0 0.0
    %1398 = vmatpush1.msra.mxu0 %v1379
    %1399 = vmatprep.subr.mxu0 0.0
    %1400 = vmatpush1.msra.mxu0 0.0
    %1401 = vmatprep.subr.mxu0 0.0
    %1402 = vmatpush1.msra.mxu0 0.0
    %1403 = vmatprep.subr.mxu0 0.0
    %1404 = vmatpush1.msra.mxu0 0.0
    %1405 = vmatprep.subr.mxu0 0.0
    %1406 = vmatpush1.msra.mxu0 0.0
    %1407 = vmatprep.subr.mxu0 0.0
    %1408 = vmatpush1.msra.mxu0 0.0
    %1409 = vmatprep.subr.mxu0 0.0
    %1410 = vmatpush1.msra.mxu0 0.0
    %1411 = vmatprep.subr.mxu0 0.0
    %1412 = vmatpush1.msra.mxu0 0.0
    %1413 = vmatprep.subr.mxu0 0.0
    %1414 = vmatpush1.msra.mxu0 0.0
    %1415 = vmatprep.subr.mxu0 0.0
    %1416 = vmatpush1.msra.mxu0 0.0
    %1417 = vmatprep.subr.mxu0 0.0
    %1418 = vmatpush1.msra.mxu0 0.0
    %1419 = vmatprep.subr.mxu0 0.0
    %1420 = vmatpush1.msra.mxu0 0.0
    %1421 = vmatprep.subr.mxu0 0.0
    %1422 = vmatpush1.msra.mxu0 0.0
    %1423 = vmatprep.subr.mxu0 0.0
    %1424 = vmatpush1.msra.mxu0 0.0
    %1425 = vmatprep.subr.mxu0 0.0
    %1426 = vmatpush1.msra.mxu0 0.0
    %1427 = vmatprep.subr.mxu0 0.0
    %1428 = vmatpush1.msra.mxu0 0.0
    %1429 = vmatprep.subr.mxu0 0.0
    %1430 = vmatpush1.msra.mxu0 0.0
    %1431 = vmatprep.subr.mxu0 0.0
    %1432 = vmatpush1.msra.mxu0 0.0
    %1433 = vmatprep.subr.mxu0 0.0
    %1434 = vmatpush1.msra.mxu0 0.0
    %1435 = vmatprep.subr.mxu0 0.0
    %1436 = vmatpush1.msra.mxu0 0.0
    %1437 = vmatprep.subr.mxu0 0.0
    %1438 = vmatpush1.msra.mxu0 0.0
    %1439 = vmatprep.subr.mxu0 0.0
    %1440 = vmatpush1.msra.mxu0 0.0
    %1441 = vmatprep.subr.mxu0 0.0
    %1442 = vmatpush1.msra.mxu0 0.0
    %1443 = vmatprep.subr.mxu0 0.0
    %1444 = vmatpush1.msra.mxu0 0.0
    %1445 = vmatprep.subr.mxu0 0.0
    %1446 = vmatpush1.msra.mxu0 0.0
    %1447 = vmatprep.subr.mxu0 0.0
    %1448 = vmatpush1.msra.mxu0 0.0
    %1449 = vmatprep.subr.mxu0 0.0
    %1450 = vmatpush1.msra.mxu0 0.0
    %1451 = vmatprep.subr.mxu0 0.0
    %1452 = vmatpush1.msra.mxu0 0.0
    %1453 = vmatprep.subr.mxu0 0.0
    %1454 = vmatpush1.msra.mxu0 0.0
    %1455 = vmatprep.mubr.f32.mxu0 0.0
    %1456 = vmatmul.mubr.f32.gmra.mrb[0].mxu0 %v1386
    %v1457 = vpop.f32.mrb[0].mxu0
    %v1458 = vadd.f32 %v1384, %v1457
    %v1459 = vpop.f32.mrb[0].mxu0
    %1460 = vmatprep.mubr.f32.mxu0 0.0
    %1461 = vmatmul.mubr.f32.gmra.mrb[0].mxu0 %v1389
    %v1462 = vpop.f32.mrb[0].mxu0
    %v1463 = vadd.f32 %v1384, %v1462
    %v1464 = vpop.f32.mrb[0].mxu0
    %1465 = vdwg.mxu0
    %v1466 = vmax.f32 %v1458, 0.0
    %v1467 = vmax.f32 %v1463, 0.0
    %v1468 = vld [vmem:[%s2 + $0x60] sm:$0xff]
    %v1469 = vld [vmem:[%s2 + $0x68] sm:$0xff]
    %v1470 = vld [vmem:[%s2 + $0x70] sm:$0xff]
    %v1471 = vld [vmem:[%s2 + $0x78] sm:$0xff]
    %v1472 = vld [vmem:[%s2 + $0x80] sm:$0xff]
    %v1473 = vld [vmem:[%s2 + $0x88] sm:$0xff]
    %v1474 = vld [vmem:[%s2 + $0x90] sm:$0xff]
    %v1475 = vld [vmem:[%s2 + $0x98] sm:$0xff]
    %v1476 = vld [vmem:[%s2 + $0x10a] sm:$0x1]
    %v1477 = vlaneseq
    %v1478 = vshrl.u32 %v1477, 7
    %v1479 = vsub.s32 0, %v1478
    %v1480 = vrot.slane %v1476, %v1479
    %vm1481 = vcmask 523264
    %v1483 = vsel %vm1481, %v1466, 0
    %v1486 = vsel %vm1481, %v1467, 0
    %1488 = vmatprep.subr.mxu0 0.0
    %1489 = vmatpush1.msra.mxu0 %v1468
    %1490 = vmatprep.subr.mxu0 0.0
    %1491 = vmatpush1.msra.mxu0 %v1469
    %1492 = vmatprep.subr.mxu0 0.0
    %1493 = vmatpush1.msra.mxu0 %v1470
    %1494 = vmatprep.subr.mxu0 0.0
    %1495 = vmatpush1.msra.mxu0 %v1471
    %1496 = vmatprep.subr.mxu0 0.0
    %1497 = vmatpush1.msra.mxu0 %v1472
    %1498 = vmatprep.subr.mxu0 0.0
    %1499 = vmatpush1.msra.mxu0 %v1473
    %1500 = vmatprep.subr.mxu0 0.0
    %1501 = vmatpush1.msra.mxu0 %v1474
    %1502 = vmatprep.subr.mxu0 0.0
    %1503 = vmatpush1.msra.mxu0 %v1475
    %1504 = vmatprep.subr.mxu0 0.0
    %1505 = vmatpush1.msra.mxu0 0.0
    %1506 = vmatprep.subr.mxu0 0.0
    %1507 = vmatpush1.msra.mxu0 0.0
    %1508 = vmatprep.subr.mxu0 0.0
    %1509 = vmatpush1.msra.mxu0 0.0
    %1510 = vmatprep.subr.mxu0 0.0
    %1511 = vmatpush1.msra.mxu0 0.0
    %1512 = vmatprep.subr.mxu0 0.0
    %1513 = vmatpush1.msra.mxu0 0.0
    %1514 = vmatprep.subr.mxu0 0.0
    %1515 = vmatpush1.msra.mxu0 0.0
    %1516 = vmatprep.subr.mxu0 0.0
    %1517 = vmatpush1.msra.mxu0 0.0
    %1518 = vmatprep.subr.mxu0 0.0
    %1519 = vmatpush1.msra.mxu0 0.0
    %1520 = vmatprep.subr.mxu0 0.0
    %1521 = vmatpush1.msra.mxu0 0.0
    %1522 = vmatprep.subr.mxu0 0.0
    %1523 = vmatpush1.msra.mxu0 0.0
    %1524 = vmatprep.subr.mxu0 0.0
    %1525 = vmatpush1.msra.mxu0 0.0
    %1526 = vmatprep.subr.mxu0 0.0
    %1527 = vmatpush1.msra.mxu0 0.0
    %1528 = vmatprep.subr.mxu0 0.0
    %1529 = vmatpush1.msra.mxu0 0.0
    %1530 = vmatprep.subr.mxu0 0.0
    %1531 = vmatpush1.msra.mxu0 0.0
    %1532 = vmatprep.subr.mxu0 0.0
    %1533 = vmatpush1.msra.mxu0 0.0
    %1534 = vmatprep.subr.mxu0 0.0
    %1535 = vmatpush1.msra.mxu0 0.0
    %1536 = vmatprep.subr.mxu0 0.0
    %1537 = vmatpush1.msra.mxu0 0.0
    %1538 = vmatprep.subr.mxu0 0.0
    %1539 = vmatpush1.msra.mxu0 0.0
    %1540 = vmatprep.subr.mxu0 0.0
    %1541 = vmatpush1.msra.mxu0 0.0
    %1542 = vmatprep.subr.mxu0 0.0
    %1543 = vmatpush1.msra.mxu0 0.0
    %1544 = vmatprep.subr.mxu0 0.0
    %1545 = vmatpush1.msra.mxu0 0.0
    %1546 = vmatprep.subr.mxu0 0.0
    %1547 = vmatpush1.msra.mxu0 0.0
    %1548 = vmatprep.subr.mxu0 0.0
    %1549 = vmatpush1.msra.mxu0 0.0
    %1550 = vmatprep.subr.mxu0 0.0
    %1551 = vmatpush1.msra.mxu0 0.0
    %1552 = vmatprep.mubr.f32.mxu0 0.0
    %1553 = vmatmul.mubr.f32.gmra.mrb[0].mxu0 %v1483
    %v1554 = vpop.f32.mrb[0].mxu0
    %v1555 = vadd.f32 %v1480, %v1554
    %v1556 = vpop.f32.mrb[0].mxu0
    %1557 = vmatprep.mubr.f32.mxu0 0.0
    %1558 = vmatmul.mubr.f32.gmra.mrb[0].mxu0 %v1486
    %v1559 = vpop.f32.mrb[0].mxu0
    %v1560 = vadd.f32 %v1480, %v1559
    %v1561 = vpop.f32.mrb[0].mxu0
    %1562 = vdwg.mxu0
    %v1563 = vadd.f32 %v1374, %v1555
    %v1564 = vadd.f32 %v1375, %v1560
    %v1565 = vld [vmem:[%s2 + $0x10b] sm:$0x1]
    %v1566 = vld [vmem:[%s2 + $0x10c] sm:$0x1]
    %v1567 = vsel %vm37, %v1563, 0.0
    %1568 = vadd.xlane.f32.xlu0 %v1567
    %v1569 = vpop.xlane.xlu0 %1568
    %v1570 = vsel %vm37, %v1564, 0.0
    %1571 = vadd.xlane.f32.xlu0 %v1570
    %v1572 = vpop.xlane.xlu0 %1571
    %v1573 = vmul.f32 %v1569, %v620
    %v1574 = vmul.f32 %v1572, %v620
    %v1575 = vsub.f32 %v1563, %v1573
    %v1576 = vsub.f32 %v1564, %v1574
    %v1577 = vmul.f32 %v1575, %v1575
    %v1578 = vmul.f32 %v1576, %v1576
    %v1579 = vsel %vm37, %v1577, 0.0
    %1580 = vadd.xlane.f32.xlu0 %v1579
    %v1581 = vpop.xlane.xlu0 %1580
    %v1582 = vsel %vm37, %v1578, 0.0
    %1583 = vadd.xlane.f32.xlu0 %v1582
    %v1584 = vpop.xlane.xlu0 %1583
    %v1585 = vmul.f32 %v1581, %v620
    %v1586 = vmul.f32 %v1584, %v620
    %v1587 = vadd.f32 %v1585, 1e-05
    %v1588 = vadd.f32 %v1586, 1e-05
    %v1589 = vrsqrt.pop %v1587
    %v1590 = vrsqrt.pop %v1588
    %v1591 = vmul.f32 %v1575, %v1589
    %v1592 = vmul.f32 %v1576, %v1590
    %v1593 = vlaneseq
    %v1594 = vshrl.u32 %v1593, 7
    %v1595 = vsub.s32 0, %v1594
    %v1596 = vrot.slane %v1565, %v1595
    %v1597 = vmul.f32 %v1591, %v1596
    %v1598 = vmul.f32 %v1592, %v1596
    %v1599 = vlaneseq
    %v1600 = vshrl.u32 %v1599, 7
    %v1601 = vsub.s32 0, %v1600
    %v1602 = vrot.slane %v1566, %v1601
    %v1603 = vadd.f32 %v1597, %v1602
    %v1604 = vadd.f32 %v1598, %v1602
    %1605 = vst.msk [vmem:[#allocation2] sm:$0xff] %vm37, %v1603
    %1606 = vst.msk [vmem:[#allocation2 + $0x8] sm:$0xff] %vm37, %v1604
    // Predicated region
    $region14: #{tpu_custom_call.1} parent=1 // pred_check
      _
    $region15: #{tpu_custom_call.1} parent=1 // pred_check_branch
      %1608 = sbr.rel (0) target = $region17
    $region16: #{tpu_custom_call.1} parent=1 // pred_region
      %s1610 = ssub.s32 256, 256
      %1611 = vsyncadd [#allocation3], %s1610
      %s1612 = sshll.u32 [#allocation2], 4
      %s1613 = int_to_ptr.vmem [resolvable:$true] %s1612
      %1618 = dma.vmem_to_hbm [thread:$0]  %s1613, 256, %s3, [#allocation3], 128, 128, 8
    $region17: #{tpu_custom_call.1} parent=1 // pred_fallthru
      _
    // Predicated region
    $region18: #{tpu_custom_call.1} parent=1 // pred_check
      _
    $region19: #{tpu_custom_call.1} parent=1 // pred_check_branch
      %1620 = sbr.rel (0) target = $region21
    $region20: #{tpu_custom_call.1} parent=1 // pred_region
      %1621 = dma.done [#allocation3], 256
    $region21: #{tpu_custom_call.1} parent=1 // pred_fallthru
      _
    %1622 = vsyncpa [#allocation3], 1

</llo_original>
